<compile_context>
chip_gen: v6e
topology: v6e:2x2x1
jax: 0.10.0
libtpu: 0.0.40
codegen_flags: <defaults>
</compile_context>

<pallas_src>
import jax
import jax.numpy as jnp
from jax.experimental import pallas as pl
from jax.experimental.pallas import tpu as pltpu

_HID0 = 256                      # hidden width and lane width of both slabs
_OUT_W = 128                     # lane width of the (padded) output slab
_FIXED_W_ROWS = 256 + 256 + 256  # rows of w1 + w2(padded cols) + w3(padded rows/cols)


def _round_up(n, m):
    return (n + m - 1) // m * m


def _mi_meta_kernel(x_ref, w_ref, p_ref, o_ref):
    """Fused Linear+BN+ReLU x3 + Linear+sigmoid on one resident batch tile."""
    eps = 1e-5
    inv_b = 1.0 / x_ref.shape[0]              # static batch size
    k_in = x_ref.shape[1]                      # real input feature count
    k_pad = w_ref.shape[0] - _FIXED_W_ROWS     # 16-aligned w0 region height

    p = p_ref[...]                             # [16, 256] f32 bias / BN params

    def bn_relu(h, g, be):
        # Training-mode BatchNorm1d (biased variance over the batch), two-pass.
        mean = jnp.sum(h, axis=0, keepdims=True) * inv_b
        c = h - mean
        var = jnp.sum(c * c, axis=0, keepdims=True) * inv_b
        return jnp.maximum(c * jax.lax.rsqrt(var + eps) * g + be, 0.0)

    def mxu(a_f32, w_bf16):
        # bf16 x bf16 MXU with f32 accumulation; activations cast just-in-time.
        return jnp.dot(a_f32.astype(jnp.bfloat16), w_bf16,
                       preferred_element_type=jnp.float32)

    x = x_ref[...]                             # [B, k_in] f32 (unpadded)

    # Layer 0: Linear(k_in -> 256) + BN + ReLU.  Only the real k_in weight
    # rows are loaded off the bf16 slab (static ref slice, no f32 copy).
    h = mxu(x, w_ref[0:k_in, :]) + p[0:1]
    h = bn_relu(h, p[1:2], p[2:3])

    # Layer 1: Linear(256 -> 256) + BN + ReLU
    h = mxu(h, w_ref[k_pad:k_pad + 256, :]) + p[3:4]
    h = bn_relu(h, p[4:5], p[5:6])

    # Layer 2: Linear(256 -> 128, cols zero-padded to 256 lanes) + BN + ReLU.
    # Padded columns are exactly 0 pre-BN and gamma/beta are 0 there, so they
    # stay 0 and never contaminate the real 128 features.
    h = mxu(h, w_ref[k_pad + 256:k_pad + 512, :]) + p[6:7]
    h = bn_relu(h, p[7:8], p[8:9])

    # Output layer: Linear(128 -> output_size), padded to 128 output lanes.
    # w3 is kept full-width in K (rows 128:255 are zero) so the full-width
    # activation feeds the dot directly (no value-slice copy of h).
    logits = mxu(h, w_ref[k_pad + 512:k_pad + 768, 0:_OUT_W]) + p[9:10, 0:_OUT_W]
    o_ref[...] = jax.nn.sigmoid(logits)


def pack_params(params):
    """One-time packing: bf16 weight slab + f32 bias/BatchNorm-parameter slab.

    Call once at parameter-init time and reuse the slabs for every forward
    call (keeps the pad/concat/astype XLA ops out of the hot path).
    Returns (w_slab, p_slab, out_size).
    """
    out_size = params["w3"].shape[1]
    assert out_size <= _OUT_W, "output_size must be <= 128 for this kernel"
    k_in = params["w0"].shape[0]
    k_pad = _round_up(k_in, 16)  # bf16 sublane-packing alignment for later regions

    def pad2(a, rows, cols):
        a = jnp.asarray(a, jnp.float32)
        return jnp.zeros((rows, cols), jnp.float32).at[:a.shape[0], :a.shape[1]].set(a)

    w_slab = jnp.concatenate(
        [
            pad2(params["w0"], k_pad, _HID0),   # [k_pad, 256]
            pad2(params["w1"], 256, _HID0),     # [256, 256]
            pad2(params["w2"], 256, _HID0),     # [256, 256] (cols 128: zero)
            pad2(params["w3"], 256, _HID0),     # [256, 256] (rows 128:, cols out: zero)
        ],
        axis=0,
    ).astype(jnp.bfloat16)

    def row(v):
        v = jnp.asarray(v, jnp.float32).reshape(1, -1)
        return jnp.zeros((1, _HID0), jnp.float32).at[:, : v.shape[1]].set(v)

    p_rows = [row(params[k]) for k in
              ("b0", "g0", "be0", "b1", "g1", "be1", "b2", "g2", "be2", "b3")]
    p_slab = jnp.concatenate(p_rows + [jnp.zeros((6, _HID0), jnp.float32)], axis=0)
    return w_slab, p_slab, out_size


def mi_meta_classifier_small(x, w_slab, p_slab, out_size):
    """Run the MIMetaClassifierSmall forward pass as one Pallas kernel.

    x: [B, input_size] float32 (unpadded)
    w_slab, p_slab: packed once via pack_params.
    """
    B, k_in = x.shape

    flops = 2 * B * (k_in * 256 + 256 * 256 + 256 * 256 + 256 * _OUT_W)
    bytes_accessed = (x.size * 4 + w_slab.size * 2 + p_slab.size * 4
                      + B * _OUT_W * 4)
    cost = pl.CostEstimate(
        flops=int(flops),
        transcendentals=int(3 * 256 + B * _OUT_W),  # rsqrt + sigmoid (advisory)
        bytes_accessed=int(bytes_accessed),
    )

    # Scoped-VMEM limit sized from the real resident footprint (full-batch
    # tile: x + slabs + a few live [B,256] f32 activations + out), capped
    # below v7x's 64 MiB physical VMEM.
    act_bytes = 6 * B * _HID0 * 4
    vmem_bytes = int(bytes_accessed + act_bytes) * 2 + (2 << 20)
    vmem_bytes = max(16 << 20, min(vmem_bytes, 56 << 20))

    vmem = pl.BlockSpec(memory_space=pltpu.VMEM)
    out = pl.pallas_call(
        _mi_meta_kernel,
        out_shape=jax.ShapeDtypeStruct((B, _OUT_W), jnp.float32),
        in_specs=[vmem, vmem, vmem],
        out_specs=vmem,
        cost_estimate=cost,
        compiler_params=pltpu.CompilerParams(vmem_limit_bytes=vmem_bytes),
    )(x, w_slab, p_slab)
    return out[:, :out_size]


def init_params(key, input_size, output_size):
    """Deterministic synthetic parameters matching the module's shapes.

    Linear weights are stored [in, out] (transposed from PyTorch's [out, in]);
    BatchNorm gamma/beta as [1, F].
    """
    keys = jax.random.split(key, 8)

    def lin(kw, kb, fan_in, fan_out):
        bound = 1.0 / jnp.sqrt(fan_in)
        w = jax.random.uniform(kw, (fan_in, fan_out), jnp.float32, -bound, bound)
        b = jax.random.uniform(kb, (1, fan_out), jnp.float32, -bound, bound)
        return w, b

    w0, b0 = lin(keys[0], keys[1], input_size, 256)
    w1, b1 = lin(keys[2], keys[3], 256, 256)
    w2, b2 = lin(keys[4], keys[5], 256, 128)
    w3, b3 = lin(keys[6], keys[7], 128, output_size)

    return {
        "w0": w0, "b0": b0,
        "g0": jnp.ones((1, 256), jnp.float32), "be0": jnp.zeros((1, 256), jnp.float32),
        "w1": w1, "b1": b1,
        "g1": jnp.ones((1, 256), jnp.float32), "be1": jnp.zeros((1, 256), jnp.float32),
        "w2": w2, "b2": b2,
        "g2": jnp.ones((1, 128), jnp.float32), "be2": jnp.zeros((1, 128), jnp.float32),
        "w3": w3, "b3": b3,
    }


def _reference_forward(x, p, eps=1e-5):
    """Pure-JAX reference mirroring the kernel numerics.

    bf16 weights and bf16 matmul activations (f32 accumulation), f32 BN with
    training-mode (biased) batch statistics.
    """
    def mm(a, w):
        return jnp.dot(a.astype(jnp.bfloat16),
                       jnp.asarray(w, jnp.float32).astype(jnp.bfloat16),
                       preferred_element_type=jnp.float32)

    def bn_relu(h, g, be):
        mean = jnp.mean(h, axis=0, keepdims=True)
        c = h - mean
        var = jnp.mean(c * c, axis=0, keepdims=True)
        return jnp.maximum(c * jax.lax.rsqrt(var + eps) * g + be, 0.0)

    h = bn_relu(mm(x, p["w0"]) + p["b0"], p["g0"], p["be0"])
    h = bn_relu(mm(h, p["w1"]) + p["b1"], p["g1"], p["be1"])
    h = bn_relu(mm(h, p["w2"]) + p["b2"], p["g2"], p["be2"])
    return jax.nn.sigmoid(mm(h, p["w3"]) + p["b3"])


if __name__ == "__main__":
    key = jax.random.PRNGKey(0)
    k_x, k_p = jax.random.split(key)

    batch = 64
    input_size = 32
    output_size = 2

    x = jax.random.normal(k_x, (batch, input_size), jnp.float32)
    params = init_params(k_p, input_size, output_size)

    # Pack once at init time; reuse the slabs for every forward call.
    w_slab, p_slab, out_size = pack_params(params)
    w_slab, p_slab = jax.block_until_ready((w_slab, p_slab))

    fwd = jax.jit(lambda xb: mi_meta_classifier_small(xb, w_slab, p_slab, out_size))
    out = jax.block_until_ready(fwd(x))
    ref = _reference_forward(x, params)

    assert out.shape == (batch, output_size)
    assert jnp.allclose(out, ref, atol=1e-3, rtol=1e-3), "mismatch vs JAX reference"

    print("KERNEL_OK")
</pallas_src>

<mosaic_0001>
module attributes {stable_mosaic.version = 11 : i64} {
  func.func @_mi_meta_kernel(%arg0: memref<64x32xf32, #tpu.memory_space<vmem>>, %arg1: memref<800x256xbf16, #tpu.memory_space<vmem>>, %arg2: memref<16x256xf32, #tpu.memory_space<vmem>>, %arg3: memref<64x128xf32, #tpu.memory_space<vmem>>) attributes {dimension_semantics = [], scalar_prefetch = 0 : i64, scratch_operands = 0 : i64, tpu.core_type = #tpu.core_type<tc>} {
    %c0 = arith.constant 0 : index
    %c0_0 = arith.constant 0 : index
    %0 = vector.load %arg2[%c0, %c0_0] : memref<16x256xf32, #tpu.memory_space<vmem>>, vector<16x256xf32>
    %c0_1 = arith.constant 0 : index
    %c0_2 = arith.constant 0 : index
    %1 = vector.load %arg0[%c0_1, %c0_2] : memref<64x32xf32, #tpu.memory_space<vmem>>, vector<64x32xf32>
    %c0_3 = arith.constant 0 : index
    %c0_4 = arith.constant 0 : index
    %2 = vector.load %arg1[%c0_3, %c0_4] : memref<800x256xbf16, #tpu.memory_space<vmem>>, vector<32x256xbf16>
    %3 = arith.truncf %1 : vector<64x32xf32> to vector<64x32xbf16>
    %cst = arith.constant dense<0.000000e+00> : vector<64x256xf32>
    %4 = tpu.matmul %3, %2, %cst {dimension_numbers = #tpu.dot_dimension_numbers<[1], [0], [0], [1], [0, 0, 1, 1], [], []>} : vector<64x32xbf16>, vector<32x256xbf16>, vector<64x256xf32> -> vector<64x256xf32>
    %5 = vector.extract_strided_slice %0 {offsets = [0, 0], sizes = [1, 256], strides = [1, 1]} : vector<16x256xf32> to vector<1x256xf32>
    %6 = vector.broadcast %5 : vector<1x256xf32> to vector<64x256xf32>
    %7 = arith.addf %4, %6 : vector<64x256xf32>
    %8 = vector.extract_strided_slice %0 {offsets = [1, 0], sizes = [1, 256], strides = [1, 1]} : vector<16x256xf32> to vector<1x256xf32>
    %9 = vector.extract_strided_slice %0 {offsets = [2, 0], sizes = [1, 256], strides = [1, 1]} : vector<16x256xf32> to vector<1x256xf32>
    %cst_5 = arith.constant dense<0.000000e+00> : vector<256xf32>
    %10 = vector.multi_reduction <add>, %7, %cst_5 [0] : vector<64x256xf32> to vector<256xf32>
    %11 = vector.shape_cast %10 : vector<256xf32> to vector<1x256xf32>
    %cst_6 = arith.constant 1.562500e-02 : f32
    %12 = vector.broadcast %cst_6 : f32 to vector<1x256xf32>
    %13 = arith.mulf %11, %12 : vector<1x256xf32>
    %14 = vector.broadcast %13 : vector<1x256xf32> to vector<64x256xf32>
    %15 = arith.subf %7, %14 : vector<64x256xf32>
    %16 = arith.mulf %15, %15 : vector<64x256xf32>
    %cst_7 = arith.constant dense<0.000000e+00> : vector<256xf32>
    %17 = vector.multi_reduction <add>, %16, %cst_7 [0] : vector<64x256xf32> to vector<256xf32>
    %18 = vector.shape_cast %17 : vector<256xf32> to vector<1x256xf32>
    %cst_8 = arith.constant 1.562500e-02 : f32
    %19 = vector.broadcast %cst_8 : f32 to vector<1x256xf32>
    %20 = arith.mulf %18, %19 : vector<1x256xf32>
    %cst_9 = arith.constant 9.99999974E-6 : f32
    %21 = vector.broadcast %cst_9 : f32 to vector<1x256xf32>
    %22 = arith.addf %20, %21 : vector<1x256xf32>
    %23 = math.rsqrt %22 : vector<1x256xf32>
    %24 = vector.broadcast %23 : vector<1x256xf32> to vector<64x256xf32>
    %25 = arith.mulf %15, %24 : vector<64x256xf32>
    %26 = vector.broadcast %8 : vector<1x256xf32> to vector<64x256xf32>
    %27 = arith.mulf %25, %26 : vector<64x256xf32>
    %28 = vector.broadcast %9 : vector<1x256xf32> to vector<64x256xf32>
    %29 = arith.addf %27, %28 : vector<64x256xf32>
    %cst_10 = arith.constant 0.000000e+00 : f32
    %30 = vector.broadcast %cst_10 : f32 to vector<64x256xf32>
    %31 = arith.maximumf %29, %30 : vector<64x256xf32>
    %c32 = arith.constant 32 : index
    %c0_11 = arith.constant 0 : index
    %32 = vector.load %arg1[%c32, %c0_11] : memref<800x256xbf16, #tpu.memory_space<vmem>>, vector<256x256xbf16>
    %33 = arith.truncf %31 : vector<64x256xf32> to vector<64x256xbf16>
    %cst_12 = arith.constant dense<0.000000e+00> : vector<64x256xf32>
    %34 = tpu.matmul %33, %32, %cst_12 {dimension_numbers = #tpu.dot_dimension_numbers<[1], [0], [0], [1], [0, 0, 1, 1], [], []>} : vector<64x256xbf16>, vector<256x256xbf16>, vector<64x256xf32> -> vector<64x256xf32>
    %35 = vector.extract_strided_slice %0 {offsets = [3, 0], sizes = [1, 256], strides = [1, 1]} : vector<16x256xf32> to vector<1x256xf32>
    %36 = vector.broadcast %35 : vector<1x256xf32> to vector<64x256xf32>
    %37 = arith.addf %34, %36 : vector<64x256xf32>
    %38 = vector.extract_strided_slice %0 {offsets = [4, 0], sizes = [1, 256], strides = [1, 1]} : vector<16x256xf32> to vector<1x256xf32>
    %39 = vector.extract_strided_slice %0 {offsets = [5, 0], sizes = [1, 256], strides = [1, 1]} : vector<16x256xf32> to vector<1x256xf32>
    %cst_13 = arith.constant dense<0.000000e+00> : vector<256xf32>
    %40 = vector.multi_reduction <add>, %37, %cst_13 [0] : vector<64x256xf32> to vector<256xf32>
    %41 = vector.shape_cast %40 : vector<256xf32> to vector<1x256xf32>
    %cst_14 = arith.constant 1.562500e-02 : f32
    %42 = vector.broadcast %cst_14 : f32 to vector<1x256xf32>
    %43 = arith.mulf %41, %42 : vector<1x256xf32>
    %44 = vector.broadcast %43 : vector<1x256xf32> to vector<64x256xf32>
    %45 = arith.subf %37, %44 : vector<64x256xf32>
    %46 = arith.mulf %45, %45 : vector<64x256xf32>
    %cst_15 = arith.constant dense<0.000000e+00> : vector<256xf32>
    %47 = vector.multi_reduction <add>, %46, %cst_15 [0] : vector<64x256xf32> to vector<256xf32>
    %48 = vector.shape_cast %47 : vector<256xf32> to vector<1x256xf32>
    %cst_16 = arith.constant 1.562500e-02 : f32
    %49 = vector.broadcast %cst_16 : f32 to vector<1x256xf32>
    %50 = arith.mulf %48, %49 : vector<1x256xf32>
    %cst_17 = arith.constant 9.99999974E-6 : f32
    %51 = vector.broadcast %cst_17 : f32 to vector<1x256xf32>
    %52 = arith.addf %50, %51 : vector<1x256xf32>
    %53 = math.rsqrt %52 : vector<1x256xf32>
    %54 = vector.broadcast %53 : vector<1x256xf32> to vector<64x256xf32>
    %55 = arith.mulf %45, %54 : vector<64x256xf32>
    %56 = vector.broadcast %38 : vector<1x256xf32> to vector<64x256xf32>
    %57 = arith.mulf %55, %56 : vector<64x256xf32>
    %58 = vector.broadcast %39 : vector<1x256xf32> to vector<64x256xf32>
    %59 = arith.addf %57, %58 : vector<64x256xf32>
    %cst_18 = arith.constant 0.000000e+00 : f32
    %60 = vector.broadcast %cst_18 : f32 to vector<64x256xf32>
    %61 = arith.maximumf %59, %60 : vector<64x256xf32>
    %c288 = arith.constant 288 : index
    %c0_19 = arith.constant 0 : index
    %62 = vector.load %arg1[%c288, %c0_19] : memref<800x256xbf16, #tpu.memory_space<vmem>>, vector<256x256xbf16>
    %63 = arith.truncf %61 : vector<64x256xf32> to vector<64x256xbf16>
    %cst_20 = arith.constant dense<0.000000e+00> : vector<64x256xf32>
    %64 = tpu.matmul %63, %62, %cst_20 {dimension_numbers = #tpu.dot_dimension_numbers<[1], [0], [0], [1], [0, 0, 1, 1], [], []>} : vector<64x256xbf16>, vector<256x256xbf16>, vector<64x256xf32> -> vector<64x256xf32>
    %65 = vector.extract_strided_slice %0 {offsets = [6, 0], sizes = [1, 256], strides = [1, 1]} : vector<16x256xf32> to vector<1x256xf32>
    %66 = vector.broadcast %65 : vector<1x256xf32> to vector<64x256xf32>
    %67 = arith.addf %64, %66 : vector<64x256xf32>
    %68 = vector.extract_strided_slice %0 {offsets = [7, 0], sizes = [1, 256], strides = [1, 1]} : vector<16x256xf32> to vector<1x256xf32>
    %69 = vector.extract_strided_slice %0 {offsets = [8, 0], sizes = [1, 256], strides = [1, 1]} : vector<16x256xf32> to vector<1x256xf32>
    %cst_21 = arith.constant dense<0.000000e+00> : vector<256xf32>
    %70 = vector.multi_reduction <add>, %67, %cst_21 [0] : vector<64x256xf32> to vector<256xf32>
    %71 = vector.shape_cast %70 : vector<256xf32> to vector<1x256xf32>
    %cst_22 = arith.constant 1.562500e-02 : f32
    %72 = vector.broadcast %cst_22 : f32 to vector<1x256xf32>
    %73 = arith.mulf %71, %72 : vector<1x256xf32>
    %74 = vector.broadcast %73 : vector<1x256xf32> to vector<64x256xf32>
    %75 = arith.subf %67, %74 : vector<64x256xf32>
    %76 = arith.mulf %75, %75 : vector<64x256xf32>
    %cst_23 = arith.constant dense<0.000000e+00> : vector<256xf32>
    %77 = vector.multi_reduction <add>, %76, %cst_23 [0] : vector<64x256xf32> to vector<256xf32>
    %78 = vector.shape_cast %77 : vector<256xf32> to vector<1x256xf32>
    %cst_24 = arith.constant 1.562500e-02 : f32
    %79 = vector.broadcast %cst_24 : f32 to vector<1x256xf32>
    %80 = arith.mulf %78, %79 : vector<1x256xf32>
    %cst_25 = arith.constant 9.99999974E-6 : f32
    %81 = vector.broadcast %cst_25 : f32 to vector<1x256xf32>
    %82 = arith.addf %80, %81 : vector<1x256xf32>
    %83 = math.rsqrt %82 : vector<1x256xf32>
    %84 = vector.broadcast %83 : vector<1x256xf32> to vector<64x256xf32>
    %85 = arith.mulf %75, %84 : vector<64x256xf32>
    %86 = vector.broadcast %68 : vector<1x256xf32> to vector<64x256xf32>
    %87 = arith.mulf %85, %86 : vector<64x256xf32>
    %88 = vector.broadcast %69 : vector<1x256xf32> to vector<64x256xf32>
    %89 = arith.addf %87, %88 : vector<64x256xf32>
    %cst_26 = arith.constant 0.000000e+00 : f32
    %90 = vector.broadcast %cst_26 : f32 to vector<64x256xf32>
    %91 = arith.maximumf %89, %90 : vector<64x256xf32>
    %c544 = arith.constant 544 : index
    %c0_27 = arith.constant 0 : index
    %92 = vector.load %arg1[%c544, %c0_27] : memref<800x256xbf16, #tpu.memory_space<vmem>>, vector<256x128xbf16>
    %93 = arith.truncf %91 : vector<64x256xf32> to vector<64x256xbf16>
    %cst_28 = arith.constant dense<0.000000e+00> : vector<64x128xf32>
    %94 = tpu.matmul %93, %92, %cst_28 {dimension_numbers = #tpu.dot_dimension_numbers<[1], [0], [0], [1], [0, 0, 1, 1], [], []>} : vector<64x256xbf16>, vector<256x128xbf16>, vector<64x128xf32> -> vector<64x128xf32>
    %95 = vector.extract_strided_slice %0 {offsets = [9, 0], sizes = [1, 128], strides = [1, 1]} : vector<16x256xf32> to vector<1x128xf32>
    %96 = vector.broadcast %95 : vector<1x128xf32> to vector<64x128xf32>
    %97 = arith.addf %94, %96 : vector<64x128xf32>
    %98 = arith.negf %97 : vector<64x128xf32>
    %99 = math.exp %98 : vector<64x128xf32>
    %cst_29 = arith.constant 1.000000e+00 : f32
    %100 = vector.broadcast %cst_29 : f32 to vector<64x128xf32>
    %101 = arith.addf %100, %99 : vector<64x128xf32>
    %102 = arith.divf %100, %101 : vector<64x128xf32>
    %c0_30 = arith.constant 0 : index
    %c0_31 = arith.constant 0 : index
    %103 = vector.load %arg3[%c0_30, %c0_31] : memref<64x128xf32, #tpu.memory_space<vmem>>, vector<64x128xf32>
    tpu.vector_store %arg3[%c0_30, %c0_31], %102 {strides = array<i32>} : memref<64x128xf32, #tpu.memory_space<vmem>>, vector<64x128xf32>,
    return
  }
}

</mosaic_0001>

<llo_original>
// kernel: _lambda_.1
$region0: #{_lambda_.1}
  #allocation0 [shape = 'u32[]', space=smem, size = 0x4, offset = 0x4, fixed_abs, tag = 'smem constant byte address 0x4 - core index']
  #allocation1 [shape = 'u32[144,128]{1,0:T(1,128)}', space=vmem, size = 0x12000, scoped, tag = 'internal scratch']
  %s0 = inlined_call_operand.vmem [shape: f32[64,32], index: 0, kind: input, shape index: {}]
  %s1 = inlined_call_operand.hbm [shape: bf16[800,256], index: 1, kind: input, shape index: {}]
  %s2 = inlined_call_operand.vmem [shape: f32[16,256], index: 2, kind: input, shape index: {}]
  %s3 = inlined_call_operand.vmem [shape: f32[64,128], index: 3, kind: output, shape index: {}]
  %s4 = sld [smem:[#allocation0]]
  $region26: #{_lambda_.1} parent=0
    _
  %s6 = ssub.s32 1, %s4
  %s7 = scalar_select 0, %s6, %s4
  $region1: #{_lambda_.1} parent=0
    #allocation2 [shape = 'u8[409600]{0}', space=vmem, size = 0x64000, scoped, tag = 'input window, operand 1, single buffered']
    #allocation3 [shape = 's32[1]{0}', space=sflag, size = 0x4, scoped, tag = 'scoped memory for _lambda_.1']
    %8 = vsyncpa [#allocation3], 0
    // Predicated region
    $region2: #{_lambda_.1} parent=1 // pred_check
      _
    $region3: #{_lambda_.1} parent=1 // pred_check_branch
      %10 = sbr.rel (0) target = $region5
    $region4: #{_lambda_.1} parent=1 // pred_region
      _
    $region5: #{_lambda_.1} parent=1 // pred_fallthru
      _
    // Predicated region
    $region6: #{_lambda_.1} parent=1 // pred_check
      _
    $region7: #{_lambda_.1} parent=1 // pred_check_branch
      %12 = sbr.rel (0) target = $region9
    $region8: #{_lambda_.1} parent=1 // pred_region
      %s14 = ssub.s32 12800, 12800
      %15 = vsyncadd [#allocation3], %s14
      %s16 = sshll.u32 [#allocation2], 4
      %s17 = int_to_ptr.vmem [resolvable:$true] %s16
      %22 = dma.hbm_to_vmem [thread:$0]  %s1, 12800, %s17, [#allocation3], 128, 128, 8
    $region9: #{_lambda_.1} parent=1 // pred_fallthru
      _
    // Predicated region
    $region10: #{_lambda_.1} parent=1 // pred_check
      _
    $region11: #{_lambda_.1} parent=1 // pred_check_branch
      %24 = sbr.rel (0) target = $region13
    $region12: #{_lambda_.1} parent=1 // pred_region
      _
    $region13: #{_lambda_.1} parent=1 // pred_fallthru
      _
    // Predicated region
    $region14: #{_lambda_.1} parent=1 // pred_check
      _
    $region15: #{_lambda_.1} parent=1 // pred_check_branch
      %26 = sbr.rel (0) target = $region17
    $region16: #{_lambda_.1} parent=1 // pred_region
      %27 = dma.done [#allocation3], 12800
    $region17: #{_lambda_.1} parent=1 // pred_fallthru
      _
    %v29 = vld [vmem:[%s2] sm:$0xff]
    %v30 = vld [vmem:[%s2 + $0x8] sm:$0xff]
    %v31 = vld [vmem:[%s2 + $0x10] sm:$0xff]
    %v32 = vld [vmem:[%s2 + $0x18] sm:$0xff]
    %v33 = vld [vmem:[%s0] sm:$0xff]
    %v34 = vld [vmem:[%s0 + $0x8] sm:$0xff]
    %v35 = vld [vmem:[%s0 + $0x10] sm:$0xff]
    %v36 = vld [vmem:[%s0 + $0x18] sm:$0xff]
    %v37 = vld [vmem:[%s0 + $0x20] sm:$0xff]
    %v38 = vld [vmem:[%s0 + $0x28] sm:$0xff]
    %v39 = vld [vmem:[%s0 + $0x30] sm:$0xff]
    %v40 = vld [vmem:[%s0 + $0x38] sm:$0xff]
    %v41 = vld [vmem:[#allocation2] sm:$0xff]
    %v42 = vld [vmem:[#allocation2 + $0x8] sm:$0xff]
    %v43 = vld [vmem:[#allocation2 + $0x10] sm:$0xff]
    %v44 = vld [vmem:[#allocation2 + $0x18] sm:$0xff]
    %v45 = vpack.c.bf16 %v34, %v33
    %v46 = vpack.c.bf16 %v36, %v35
    %v47 = vpack.c.bf16 %v38, %v37
    %v48 = vpack.c.bf16 %v40, %v39
    %v49 = vlaneseq
    %v50 = vshrl.u32 %v49, 7
    %v51 = vsub.s32 0, %v50
    %v52 = vrot.slane %v29, %v51
    %v53 = vlaneseq
    %v54 = vshrl.u32 %v53, 7
    %v55 = vsub.s32 0, %v54
    %v56 = vrot.slane %v30, %v55
    %v61 = vunpack.c.l.b16 %v41
    %v62 = vunpack.c.h.b16 %v41
    %v63 = vunpack.c.l.b16 %v42
    %v64 = vunpack.c.h.b16 %v42
    %v65 = vunpack.c.l.b16 %v43
    %v66 = vunpack.c.h.b16 %v43
    %v67 = vunpack.c.l.b16 %v44
    %v68 = vunpack.c.h.b16 %v44
    %v69 = vpack.c.b16 %v63, %v61
    %v70 = vpack.c.b16 %v64, %v62
    %v71 = vpack.c.b16 %v67, %v65
    %v72 = vpack.c.b16 %v68, %v66
    %vm77 = vcmask 261120
    %v79 = vsel %vm77, %v45, 0
    %v82 = vsel %vm77, %v46, 0
    %v85 = vsel %vm77, %v47, 0
    %v88 = vsel %vm77, %v48, 0
    %90 = vmatprep.subr.bf16.mxu0 0
    %91 = vmatpush1.bf16.msra.mxu0 0
    %92 = vmatprep.subr.bf16.mxu0 0
    %93 = vmatpush1.bf16.msra.mxu0 0
    %94 = vmatprep.subr.bf16.mxu0 0
    %95 = vmatpush1.bf16.msra.mxu0 0
    %96 = vmatprep.subr.bf16.mxu0 0
    %97 = vmatpush1.bf16.msra.mxu0 0
    %98 = vmatprep.subr.bf16.mxu0 0
    %99 = vmatpush1.bf16.msra.mxu0 0
    %100 = vmatprep.subr.bf16.mxu0 0
    %101 = vmatpush1.bf16.msra.mxu0 0
    %102 = vmatprep.subr.bf16.mxu0 %v72
    %103 = vmatpush1.bf16.msra.mxu0 %v71
    %104 = vmatprep.subr.bf16.mxu0 %v70
    %105 = vmatpush1.bf16.msra.mxu0 %v69
    %106 = vmatprep.subr.bf16.mxu0 0
    %107 = vmatpush2.bf16.msra.mxu0 0
    %108 = vmatprep.subr.bf16.mxu0 0
    %109 = vmatpush2.bf16.msra.mxu0 0
    %110 = vmatprep.subr.bf16.mxu0 0
    %111 = vmatpush2.bf16.msra.mxu0 0
    %112 = vmatprep.subr.bf16.mxu0 0
    %113 = vmatpush2.bf16.msra.mxu0 0
    %114 = vmatprep.subr.bf16.mxu0 0
    %115 = vmatpush2.bf16.msra.mxu0 0
    %116 = vmatprep.subr.bf16.mxu0 0
    %117 = vmatpush2.bf16.msra.mxu0 0
    %118 = vmatprep.subr.bf16.mxu0 0
    %119 = vmatpush2.bf16.msra.mxu0 0
    %120 = vmatprep.subr.bf16.mxu0 0
    %121 = vmatpush2.bf16.msra.mxu0 0
    %122 = vmatprep.mubr.bf16.mxu0 0
    %123 = vmatmul.mubr.bf16.gmra.mxu0 %v79
    %v124 = vpop.f32.mrf.mxu0
    %v125 = vadd.f32 %v52, %v124
    %v126 = vpop.f32.mrf.mxu0
    %v127 = vadd.f32 %v56, %v126
    %v128 = vpop.f32.mrf.mxu0
    %v129 = vadd.f32 %v52, %v128
    %v130 = vpop.f32.mrf.mxu0
    %v131 = vadd.f32 %v56, %v130
    %132 = vmatprep.mubr.bf16.mxu0 0
    %133 = vmatmul.mubr.bf16.gmra.mxu0 %v82
    %v134 = vpop.f32.mrf.mxu0
    %v135 = vadd.f32 %v52, %v134
    %v136 = vpop.f32.mrf.mxu0
    %v137 = vadd.f32 %v56, %v136
    %v138 = vpop.f32.mrf.mxu0
    %v139 = vadd.f32 %v52, %v138
    %v140 = vpop.f32.mrf.mxu0
    %v141 = vadd.f32 %v56, %v140
    %142 = vmatprep.mubr.bf16.mxu0 0
    %143 = vmatmul.mubr.bf16.gmra.mxu0 %v85
    %v144 = vpop.f32.mrf.mxu0
    %v145 = vadd.f32 %v52, %v144
    %v146 = vpop.f32.mrf.mxu0
    %v147 = vadd.f32 %v56, %v146
    %v148 = vpop.f32.mrf.mxu0
    %v149 = vadd.f32 %v52, %v148
    %v150 = vpop.f32.mrf.mxu0
    %v151 = vadd.f32 %v56, %v150
    %152 = vmatprep.mubr.bf16.mxu0 0
    %153 = vmatmul.mubr.bf16.gmra.mxu0 %v88
    %v154 = vpop.f32.mrf.mxu0
    %v155 = vadd.f32 %v52, %v154
    %v156 = vpop.f32.mrf.mxu0
    %v157 = vadd.f32 %v56, %v156
    %v158 = vpop.f32.mrf.mxu0
    %v159 = vadd.f32 %v52, %v158
    %v160 = vpop.f32.mrf.mxu0
    %v161 = vadd.f32 %v56, %v160
    %162 = vdwg.mxu0
    %v163 = vadd.f32 %v125, %v129
    %v164 = vadd.f32 %v163, %v135
    %v165 = vadd.f32 %v164, %v139
    %v166 = vadd.f32 %v165, %v145
    %v167 = vadd.f32 %v166, %v149
    %v168 = vadd.f32 %v167, %v155
    %v169 = vadd.f32 %v168, %v159
    %v170 = vrot.slane %v169, 4
    %v171 = vadd.f32 %v169, %v170
    %v172 = vrot.slane %v171, 2
    %v173 = vadd.f32 %v171, %v172
    %v174 = vrot.slane %v173, 1
    %v175 = vadd.f32 %v173, %v174
    %v176 = vadd.f32 %v127, %v131
    %v177 = vadd.f32 %v176, %v137
    %v178 = vadd.f32 %v177, %v141
    %v179 = vadd.f32 %v178, %v147
    %v180 = vadd.f32 %v179, %v151
    %v181 = vadd.f32 %v180, %v157
    %v182 = vadd.f32 %v181, %v161
    %v183 = vrot.slane %v182, 4
    %v184 = vadd.f32 %v182, %v183
    %v185 = vrot.slane %v184, 2
    %v186 = vadd.f32 %v184, %v185
    %v187 = vrot.slane %v186, 1
    %v188 = vadd.f32 %v186, %v187
    %v189 = vmul.f32 %v175, 0.015625
    %v190 = vmul.f32 %v188, 0.015625
    %v191 = vsub.f32 %v125, %v189
    %v192 = vsub.f32 %v127, %v190
    %v193 = vsub.f32 %v129, %v189
    %v194 = vsub.f32 %v131, %v190
    %v195 = vsub.f32 %v135, %v189
    %v196 = vsub.f32 %v137, %v190
    %v197 = vsub.f32 %v139, %v189
    %v198 = vsub.f32 %v141, %v190
    %v199 = vsub.f32 %v145, %v189
    %v200 = vsub.f32 %v147, %v190
    %v201 = vsub.f32 %v149, %v189
    %v202 = vsub.f32 %v151, %v190
    %v203 = vsub.f32 %v155, %v189
    %v204 = vsub.f32 %v157, %v190
    %v205 = vsub.f32 %v159, %v189
    %v206 = vsub.f32 %v161, %v190
    %v207 = vmul.f32 %v191, %v191
    %v208 = vmul.f32 %v192, %v192
    %v209 = vmul.f32 %v193, %v193
    %v210 = vmul.f32 %v194, %v194
    %v211 = vmul.f32 %v195, %v195
    %v212 = vmul.f32 %v196, %v196
    %v213 = vmul.f32 %v197, %v197
    %v214 = vmul.f32 %v198, %v198
    %v215 = vmul.f32 %v199, %v199
    %v216 = vmul.f32 %v200, %v200
    %v217 = vmul.f32 %v201, %v201
    %v218 = vmul.f32 %v202, %v202
    %v219 = vmul.f32 %v203, %v203
    %v220 = vmul.f32 %v204, %v204
    %v221 = vmul.f32 %v205, %v205
    %v222 = vmul.f32 %v206, %v206
    %v223 = vadd.f32 %v207, %v209
    %v224 = vadd.f32 %v223, %v211
    %v225 = vadd.f32 %v224, %v213
    %v226 = vadd.f32 %v225, %v215
    %v227 = vadd.f32 %v226, %v217
    %v228 = vadd.f32 %v227, %v219
    %v229 = vadd.f32 %v228, %v221
    %v230 = vrot.slane %v229, 4
    %v231 = vadd.f32 %v229, %v230
    %v232 = vrot.slane %v231, 2
    %v233 = vadd.f32 %v231, %v232
    %v234 = vrot.slane %v233, 1
    %v235 = vadd.f32 %v233, %v234
    %v236 = vadd.f32 %v208, %v210
    %v237 = vadd.f32 %v236, %v212
    %v238 = vadd.f32 %v237, %v214
    %v239 = vadd.f32 %v238, %v216
    %v240 = vadd.f32 %v239, %v218
    %v241 = vadd.f32 %v240, %v220
    %v242 = vadd.f32 %v241, %v222
    %v243 = vrot.slane %v242, 4
    %v244 = vadd.f32 %v242, %v243
    %v245 = vrot.slane %v244, 2
    %v246 = vadd.f32 %v244, %v245
    %v247 = vrot.slane %v246, 1
    %v248 = vadd.f32 %v246, %v247
    %v249 = vmul.f32 %v235, 0.015625
    %v250 = vmul.f32 %v248, 0.015625
    %v251 = vadd.f32 %v249, 1e-05
    %v252 = vadd.f32 %v250, 1e-05
    %v253 = vrsqrt.pop %v251
    %v254 = vrsqrt.pop %v252
    %v255 = vmul.f32 %v191, %v253
    %v256 = vmul.f32 %v192, %v254
    %v257 = vmul.f32 %v193, %v253
    %v258 = vmul.f32 %v194, %v254
    %v259 = vmul.f32 %v195, %v253
    %v260 = vmul.f32 %v196, %v254
    %v261 = vmul.f32 %v197, %v253
    %v262 = vmul.f32 %v198, %v254
    %v263 = vmul.f32 %v199, %v253
    %v264 = vmul.f32 %v200, %v254
    %v265 = vmul.f32 %v201, %v253
    %v266 = vmul.f32 %v202, %v254
    %v267 = vmul.f32 %v203, %v253
    %v268 = vmul.f32 %v204, %v254
    %v269 = vmul.f32 %v205, %v253
    %v270 = vmul.f32 %v206, %v254
    %v271 = vlaneseq
    %v272 = vshrl.u32 %v271, 7
    %v273 = vsub.s32 1, %v272
    %v274 = vrot.slane %v29, %v273
    %v275 = vlaneseq
    %v276 = vshrl.u32 %v275, 7
    %v277 = vsub.s32 1, %v276
    %v278 = vrot.slane %v30, %v277
    %v279 = vmul.f32 %v255, %v274
    %v280 = vmul.f32 %v256, %v278
    %v281 = vmul.f32 %v257, %v274
    %v282 = vmul.f32 %v258, %v278
    %v283 = vmul.f32 %v259, %v274
    %v284 = vmul.f32 %v260, %v278
    %v285 = vmul.f32 %v261, %v274
    %v286 = vmul.f32 %v262, %v278
    %v287 = vmul.f32 %v263, %v274
    %v288 = vmul.f32 %v264, %v278
    %v289 = vmul.f32 %v265, %v274
    %v290 = vmul.f32 %v266, %v278
    %v291 = vmul.f32 %v267, %v274
    %v292 = vmul.f32 %v268, %v278
    %v293 = vmul.f32 %v269, %v274
    %v294 = vmul.f32 %v270, %v278
    %v295 = vlaneseq
    %v296 = vshrl.u32 %v295, 7
    %v297 = vsub.s32 2, %v296
    %v298 = vrot.slane %v29, %v297
    %v299 = vlaneseq
    %v300 = vshrl.u32 %v299, 7
    %v301 = vsub.s32 2, %v300
    %v302 = vrot.slane %v30, %v301
    %v303 = vadd.f32 %v279, %v298
    %v304 = vadd.f32 %v280, %v302
    %v305 = vadd.f32 %v281, %v298
    %v306 = vadd.f32 %v282, %v302
    %v307 = vadd.f32 %v283, %v298
    %v308 = vadd.f32 %v284, %v302
    %v309 = vadd.f32 %v285, %v298
    %v310 = vadd.f32 %v286, %v302
    %v311 = vadd.f32 %v287, %v298
    %v312 = vadd.f32 %v288, %v302
    %v313 = vadd.f32 %v289, %v298
    %v314 = vadd.f32 %v290, %v302
    %v315 = vadd.f32 %v291, %v298
    %v316 = vadd.f32 %v292, %v302
    %v317 = vadd.f32 %v293, %v298
    %v318 = vadd.f32 %v294, %v302
    %v319 = vmax.f32 %v303, 0.0
    %v320 = vmax.f32 %v304, 0.0
    %v321 = vmax.f32 %v305, 0.0
    %v322 = vmax.f32 %v306, 0.0
    %v323 = vmax.f32 %v307, 0.0
    %v324 = vmax.f32 %v308, 0.0
    %v325 = vmax.f32 %v309, 0.0
    %v326 = vmax.f32 %v310, 0.0
    %v327 = vmax.f32 %v311, 0.0
    %v328 = vmax.f32 %v312, 0.0
    %v329 = vmax.f32 %v313, 0.0
    %v330 = vmax.f32 %v314, 0.0
    %v331 = vmax.f32 %v315, 0.0
    %v332 = vmax.f32 %v316, 0.0
    %v333 = vmax.f32 %v317, 0.0
    %v334 = vmax.f32 %v318, 0.0
    %v335 = vld [vmem:[#allocation2 + $0x20] sm:$0xff]
    %v336 = vld [vmem:[#allocation2 + $0x28] sm:$0xff]
    %v337 = vld [vmem:[#allocation2 + $0x30] sm:$0xff]
    %v338 = vld [vmem:[#allocation2 + $0x38] sm:$0xff]
    %v339 = vld [vmem:[#allocation2 + $0x40] sm:$0xff]
    %v340 = vld [vmem:[#allocation2 + $0x48] sm:$0xff]
    %v341 = vld [vmem:[#allocation2 + $0x50] sm:$0xff]
    %v342 = vld [vmem:[#allocation2 + $0x58] sm:$0xff]
    %v343 = vld [vmem:[#allocation2 + $0x60] sm:$0xff]
    %v344 = vld [vmem:[#allocation2 + $0x68] sm:$0xff]
    %v345 = vld [vmem:[#allocation2 + $0x70] sm:$0xff]
    %v346 = vld [vmem:[#allocation2 + $0x78] sm:$0xff]
    %v347 = vld [vmem:[#allocation2 + $0x80] sm:$0xff]
    %v348 = vld [vmem:[#allocation2 + $0x88] sm:$0xff]
    %v349 = vld [vmem:[#allocation2 + $0x90] sm:$0xff]
    %v350 = vld [vmem:[#allocation2 + $0x98] sm:$0xff]
    %v351 = vld [vmem:[#allocation2 + $0xa0] sm:$0xff]
    %v352 = vld [vmem:[#allocation2 + $0xa8] sm:$0xff]
    %v353 = vld [vmem:[#allocation2 + $0xb0] sm:$0xff]
    %v354 = vld [vmem:[#allocation2 + $0xb8] sm:$0xff]
    %v355 = vld [vmem:[#allocation2 + $0xc0] sm:$0xff]
    %v356 = vld [vmem:[#allocation2 + $0xc8] sm:$0xff]
    %v357 = vld [vmem:[#allocation2 + $0xd0] sm:$0xff]
    %v358 = vld [vmem:[#allocation2 + $0xd8] sm:$0xff]
    %v359 = vld [vmem:[#allocation2 + $0xe0] sm:$0xff]
    %v360 = vld [vmem:[#allocation2 + $0xe8] sm:$0xff]
    %v361 = vld [vmem:[#allocation2 + $0xf0] sm:$0xff]
    %v362 = vld [vmem:[#allocation2 + $0xf8] sm:$0xff]
    %v363 = vld [vmem:[#allocation2 + $0x100] sm:$0xff]
    %v364 = vld [vmem:[#allocation2 + $0x108] sm:$0xff]
    %v365 = vld [vmem:[#allocation2 + $0x110] sm:$0xff]
    %v366 = vld [vmem:[#allocation2 + $0x118] sm:$0xff]
    %v367 = vpack.c.bf16 %v321, %v319
    %v368 = vpack.c.bf16 %v322, %v320
    %v369 = vpack.c.bf16 %v325, %v323
    %v370 = vpack.c.bf16 %v326, %v324
    %v371 = vpack.c.bf16 %v329, %v327
    %v372 = vpack.c.bf16 %v330, %v328
    %v373 = vpack.c.bf16 %v333, %v331
    %v374 = vpack.c.bf16 %v334, %v332
    %v375 = vlaneseq
    %v376 = vshrl.u32 %v375, 7
    %v377 = vsub.s32 3, %v376
    %v378 = vrot.slane %v29, %v377
    %v379 = vlaneseq
    %v380 = vshrl.u32 %v379, 7
    %v381 = vsub.s32 3, %v380
    %v382 = vrot.slane %v30, %v381
    %v415 = vunpack.c.l.b16 %v335
    %v416 = vunpack.c.h.b16 %v335
    %v417 = vunpack.c.l.b16 %v336
    %v418 = vunpack.c.h.b16 %v336
    %v419 = vunpack.c.l.b16 %v337
    %v420 = vunpack.c.h.b16 %v337
    %v421 = vunpack.c.l.b16 %v338
    %v422 = vunpack.c.h.b16 %v338
    %v423 = vunpack.c.l.b16 %v339
    %v424 = vunpack.c.h.b16 %v339
    %v425 = vunpack.c.l.b16 %v340
    %v426 = vunpack.c.h.b16 %v340
    %v427 = vunpack.c.l.b16 %v341
    %v428 = vunpack.c.h.b16 %v341
    %v429 = vunpack.c.l.b16 %v342
    %v430 = vunpack.c.h.b16 %v342
    %v431 = vunpack.c.l.b16 %v343
    %v432 = vunpack.c.h.b16 %v343
    %v433 = vunpack.c.l.b16 %v344
    %v434 = vunpack.c.h.b16 %v344
    %v435 = vunpack.c.l.b16 %v345
    %v436 = vunpack.c.h.b16 %v345
    %v437 = vunpack.c.l.b16 %v346
    %v438 = vunpack.c.h.b16 %v346
    %v439 = vunpack.c.l.b16 %v347
    %v440 = vunpack.c.h.b16 %v347
    %v441 = vunpack.c.l.b16 %v348
    %v442 = vunpack.c.h.b16 %v348
    %v443 = vunpack.c.l.b16 %v349
    %v444 = vunpack.c.h.b16 %v349
    %v445 = vunpack.c.l.b16 %v350
    %v446 = vunpack.c.h.b16 %v350
    %v447 = vunpack.c.l.b16 %v351
    %v448 = vunpack.c.h.b16 %v351
    %v449 = vunpack.c.l.b16 %v352
    %v450 = vunpack.c.h.b16 %v352
    %v451 = vunpack.c.l.b16 %v353
    %v452 = vunpack.c.h.b16 %v353
    %v453 = vunpack.c.l.b16 %v354
    %v454 = vunpack.c.h.b16 %v354
    %v455 = vunpack.c.l.b16 %v355
    %v456 = vunpack.c.h.b16 %v355
    %v457 = vunpack.c.l.b16 %v356
    %v458 = vunpack.c.h.b16 %v356
    %v459 = vunpack.c.l.b16 %v357
    %v460 = vunpack.c.h.b16 %v357
    %v461 = vunpack.c.l.b16 %v358
    %v462 = vunpack.c.h.b16 %v358
    %v463 = vunpack.c.l.b16 %v359
    %v464 = vunpack.c.h.b16 %v359
    %v465 = vunpack.c.l.b16 %v360
    %v466 = vunpack.c.h.b16 %v360
    %v467 = vunpack.c.l.b16 %v361
    %v468 = vunpack.c.h.b16 %v361
    %v469 = vunpack.c.l.b16 %v362
    %v470 = vunpack.c.h.b16 %v362
    %v471 = vunpack.c.l.b16 %v363
    %v472 = vunpack.c.h.b16 %v363
    %v473 = vunpack.c.l.b16 %v364
    %v474 = vunpack.c.h.b16 %v364
    %v475 = vunpack.c.l.b16 %v365
    %v476 = vunpack.c.h.b16 %v365
    %v477 = vunpack.c.l.b16 %v366
    %v478 = vunpack.c.h.b16 %v366
    %v479 = vpack.c.b16 %v417, %v415
    %v480 = vpack.c.b16 %v418, %v416
    %v481 = vpack.c.b16 %v421, %v419
    %v482 = vpack.c.b16 %v422, %v420
    %v483 = vpack.c.b16 %v425, %v423
    %v484 = vpack.c.b16 %v426, %v424
    %v485 = vpack.c.b16 %v429, %v427
    %v486 = vpack.c.b16 %v430, %v428
    %v487 = vpack.c.b16 %v433, %v431
    %v488 = vpack.c.b16 %v434, %v432
    %v489 = vpack.c.b16 %v437, %v435
    %v490 = vpack.c.b16 %v438, %v436
    %v491 = vpack.c.b16 %v441, %v439
    %v492 = vpack.c.b16 %v442, %v440
    %v493 = vpack.c.b16 %v445, %v443
    %v494 = vpack.c.b16 %v446, %v444
    %v495 = vpack.c.b16 %v449, %v447
    %v496 = vpack.c.b16 %v450, %v448
    %v497 = vpack.c.b16 %v453, %v451
    %v498 = vpack.c.b16 %v454, %v452
    %v499 = vpack.c.b16 %v457, %v455
    %v500 = vpack.c.b16 %v458, %v456
    %v501 = vpack.c.b16 %v461, %v459
    %v502 = vpack.c.b16 %v462, %v460
    %v503 = vpack.c.b16 %v465, %v463
    %v504 = vpack.c.b16 %v466, %v464
    %v505 = vpack.c.b16 %v469, %v467
    %v506 = vpack.c.b16 %v470, %v468
    %v507 = vpack.c.b16 %v473, %v471
    %v508 = vpack.c.b16 %v474, %v472
    %v509 = vpack.c.b16 %v477, %v475
    %v510 = vpack.c.b16 %v478, %v476
    %543 = vmatprep.subr.bf16.mxu0 %v494
    %544 = vmatpush1.bf16.msra.mxu0 %v493
    %545 = vmatprep.subr.bf16.mxu0 %v492
    %546 = vmatpush1.bf16.msra.mxu0 %v491
    %547 = vmatprep.subr.bf16.mxu0 %v490
    %548 = vmatpush1.bf16.msra.mxu0 %v489
    %549 = vmatprep.subr.bf16.mxu0 %v488
    %550 = vmatpush1.bf16.msra.mxu0 %v487
    %551 = vmatprep.subr.bf16.mxu0 %v486
    %552 = vmatpush1.bf16.msra.mxu0 %v485
    %553 = vmatprep.subr.bf16.mxu0 %v484
    %554 = vmatpush1.bf16.msra.mxu0 %v483
    %555 = vmatprep.subr.bf16.mxu0 %v482
    %556 = vmatpush1.bf16.msra.mxu0 %v481
    %557 = vmatprep.subr.bf16.mxu0 %v480
    %558 = vmatpush1.bf16.msra.mxu0 %v479
    %559 = vmatprep.subr.bf16.mxu0 %v510
    %560 = vmatpush2.bf16.msra.mxu0 %v509
    %561 = vmatprep.subr.bf16.mxu0 %v508
    %562 = vmatpush2.bf16.msra.mxu0 %v507
    %563 = vmatprep.subr.bf16.mxu0 %v506
    %564 = vmatpush2.bf16.msra.mxu0 %v505
    %565 = vmatprep.subr.bf16.mxu0 %v504
    %566 = vmatpush2.bf16.msra.mxu0 %v503
    %567 = vmatprep.subr.bf16.mxu0 %v502
    %568 = vmatpush2.bf16.msra.mxu0 %v501
    %569 = vmatprep.subr.bf16.mxu0 %v500
    %570 = vmatpush2.bf16.msra.mxu0 %v499
    %571 = vmatprep.subr.bf16.mxu0 %v498
    %572 = vmatpush2.bf16.msra.mxu0 %v497
    %573 = vmatprep.subr.bf16.mxu0 %v496
    %574 = vmatpush2.bf16.msra.mxu0 %v495
    %575 = vmatprep.mubr.bf16.mxu0 %v368
    %576 = vmatmul.mubr.bf16.gmra.mxu0 %v367
    %v577 = vpop.f32.mrf.mxu0
    %v578 = vadd.f32 %v378, %v577
    %v579 = vpop.f32.mrf.mxu0
    %v580 = vadd.f32 %v382, %v579
    %v581 = vpop.f32.mrf.mxu0
    %v582 = vadd.f32 %v378, %v581
    %v583 = vpop.f32.mrf.mxu0
    %v584 = vadd.f32 %v382, %v583
    %585 = vmatprep.mubr.bf16.mxu0 %v370
    %586 = vmatmul.mubr.bf16.gmra.mxu0 %v369
    %v587 = vpop.f32.mrf.mxu0
    %v588 = vadd.f32 %v378, %v587
    %v589 = vpop.f32.mrf.mxu0
    %v590 = vadd.f32 %v382, %v589
    %v591 = vpop.f32.mrf.mxu0
    %v592 = vadd.f32 %v378, %v591
    %v593 = vpop.f32.mrf.mxu0
    %v594 = vadd.f32 %v382, %v593
    %595 = vmatprep.mubr.bf16.mxu0 %v372
    %596 = vmatmul.mubr.bf16.gmra.mxu0 %v371
    %v597 = vpop.f32.mrf.mxu0
    %v598 = vadd.f32 %v378, %v597
    %v599 = vpop.f32.mrf.mxu0
    %v600 = vadd.f32 %v382, %v599
    %v601 = vpop.f32.mrf.mxu0
    %v602 = vadd.f32 %v378, %v601
    %v603 = vpop.f32.mrf.mxu0
    %v604 = vadd.f32 %v382, %v603
    %605 = vmatprep.mubr.bf16.mxu0 %v374
    %606 = vmatmul.mubr.bf16.gmra.mxu0 %v373
    %v607 = vpop.f32.mrf.mxu0
    %v608 = vadd.f32 %v378, %v607
    %v609 = vpop.f32.mrf.mxu0
    %v610 = vadd.f32 %v382, %v609
    %v611 = vpop.f32.mrf.mxu0
    %v612 = vadd.f32 %v378, %v611
    %v613 = vpop.f32.mrf.mxu0
    %v614 = vadd.f32 %v382, %v613
    %615 = vdwg.mxu0
    %v616 = vadd.f32 %v578, %v582
    %v617 = vadd.f32 %v616, %v588
    %v618 = vadd.f32 %v617, %v592
    %v619 = vadd.f32 %v618, %v598
    %v620 = vadd.f32 %v619, %v602
    %v621 = vadd.f32 %v620, %v608
    %v622 = vadd.f32 %v621, %v612
    %v623 = vrot.slane %v622, 4
    %v624 = vadd.f32 %v622, %v623
    %v625 = vrot.slane %v624, 2
    %v626 = vadd.f32 %v624, %v625
    %v627 = vrot.slane %v626, 1
    %v628 = vadd.f32 %v626, %v627
    %v629 = vadd.f32 %v580, %v584
    %v630 = vadd.f32 %v629, %v590
    %v631 = vadd.f32 %v630, %v594
    %v632 = vadd.f32 %v631, %v600
    %v633 = vadd.f32 %v632, %v604
    %v634 = vadd.f32 %v633, %v610
    %v635 = vadd.f32 %v634, %v614
    %v636 = vrot.slane %v635, 4
    %v637 = vadd.f32 %v635, %v636
    %v638 = vrot.slane %v637, 2
    %v639 = vadd.f32 %v637, %v638
    %v640 = vrot.slane %v639, 1
    %v641 = vadd.f32 %v639, %v640
    %v642 = vmul.f32 %v628, 0.015625
    %v643 = vmul.f32 %v641, 0.015625
    %v644 = vsub.f32 %v578, %v642
    %v645 = vsub.f32 %v580, %v643
    %v646 = vsub.f32 %v582, %v642
    %v647 = vsub.f32 %v584, %v643
    %v648 = vsub.f32 %v588, %v642
    %v649 = vsub.f32 %v590, %v643
    %v650 = vsub.f32 %v592, %v642
    %v651 = vsub.f32 %v594, %v643
    %v652 = vsub.f32 %v598, %v642
    %v653 = vsub.f32 %v600, %v643
    %v654 = vsub.f32 %v602, %v642
    %v655 = vsub.f32 %v604, %v643
    %v656 = vsub.f32 %v608, %v642
    %v657 = vsub.f32 %v610, %v643
    %v658 = vsub.f32 %v612, %v642
    %v659 = vsub.f32 %v614, %v643
    %v660 = vmul.f32 %v644, %v644
    %v661 = vmul.f32 %v645, %v645
    %v662 = vmul.f32 %v646, %v646
    %v663 = vmul.f32 %v647, %v647
    %v664 = vmul.f32 %v648, %v648
    %v665 = vmul.f32 %v649, %v649
    %v666 = vmul.f32 %v650, %v650
    %v667 = vmul.f32 %v651, %v651
    %v668 = vmul.f32 %v652, %v652
    %v669 = vmul.f32 %v653, %v653
    %v670 = vmul.f32 %v654, %v654
    %v671 = vmul.f32 %v655, %v655
    %v672 = vmul.f32 %v656, %v656
    %v673 = vmul.f32 %v657, %v657
    %v674 = vmul.f32 %v658, %v658
    %v675 = vmul.f32 %v659, %v659
    %v676 = vadd.f32 %v660, %v662
    %v677 = vadd.f32 %v676, %v664
    %v678 = vadd.f32 %v677, %v666
    %v679 = vadd.f32 %v678, %v668
    %v680 = vadd.f32 %v679, %v670
    %v681 = vadd.f32 %v680, %v672
    %v682 = vadd.f32 %v681, %v674
    %v683 = vrot.slane %v682, 4
    %v684 = vadd.f32 %v682, %v683
    %v685 = vrot.slane %v684, 2
    %v686 = vadd.f32 %v684, %v685
    %v687 = vrot.slane %v686, 1
    %v688 = vadd.f32 %v686, %v687
    %v689 = vadd.f32 %v661, %v663
    %v690 = vadd.f32 %v689, %v665
    %v691 = vadd.f32 %v690, %v667
    %v692 = vadd.f32 %v691, %v669
    %v693 = vadd.f32 %v692, %v671
    %v694 = vadd.f32 %v693, %v673
    %v695 = vadd.f32 %v694, %v675
    %v696 = vrot.slane %v695, 4
    %v697 = vadd.f32 %v695, %v696
    %v698 = vrot.slane %v697, 2
    %v699 = vadd.f32 %v697, %v698
    %v700 = vrot.slane %v699, 1
    %v701 = vadd.f32 %v699, %v700
    %v702 = vmul.f32 %v688, 0.015625
    %v703 = vmul.f32 %v701, 0.015625
    %v704 = vadd.f32 %v702, 1e-05
    %v705 = vadd.f32 %v703, 1e-05
    %v706 = vrsqrt.pop %v704
    %v707 = vrsqrt.pop %v705
    %v708 = vmul.f32 %v644, %v706
    %v709 = vmul.f32 %v645, %v707
    %v710 = vmul.f32 %v646, %v706
    %v711 = vmul.f32 %v647, %v707
    %v712 = vmul.f32 %v648, %v706
    %v713 = vmul.f32 %v649, %v707
    %v714 = vmul.f32 %v650, %v706
    %v715 = vmul.f32 %v651, %v707
    %v716 = vmul.f32 %v652, %v706
    %v717 = vmul.f32 %v653, %v707
    %v718 = vmul.f32 %v654, %v706
    %v719 = vmul.f32 %v655, %v707
    %v720 = vmul.f32 %v656, %v706
    %v721 = vmul.f32 %v657, %v707
    %v722 = vmul.f32 %v658, %v706
    %v723 = vmul.f32 %v659, %v707
    %v724 = vlaneseq
    %v725 = vshrl.u32 %v724, 7
    %v726 = vsub.s32 4, %v725
    %v727 = vrot.slane %v29, %v726
    %v728 = vlaneseq
    %v729 = vshrl.u32 %v728, 7
    %v730 = vsub.s32 4, %v729
    %v731 = vrot.slane %v30, %v730
    %v732 = vmul.f32 %v708, %v727
    %v733 = vmul.f32 %v709, %v731
    %v734 = vmul.f32 %v710, %v727
    %v735 = vmul.f32 %v711, %v731
    %v736 = vmul.f32 %v712, %v727
    %v737 = vmul.f32 %v713, %v731
    %v738 = vmul.f32 %v714, %v727
    %v739 = vmul.f32 %v715, %v731
    %v740 = vmul.f32 %v716, %v727
    %v741 = vmul.f32 %v717, %v731
    %v742 = vmul.f32 %v718, %v727
    %v743 = vmul.f32 %v719, %v731
    %v744 = vmul.f32 %v720, %v727
    %v745 = vmul.f32 %v721, %v731
    %v746 = vmul.f32 %v722, %v727
    %v747 = vmul.f32 %v723, %v731
    %v748 = vlaneseq
    %v749 = vshrl.u32 %v748, 7
    %v750 = vsub.s32 5, %v749
    %v751 = vrot.slane %v29, %v750
    %v752 = vlaneseq
    %v753 = vshrl.u32 %v752, 7
    %v754 = vsub.s32 5, %v753
    %v755 = vrot.slane %v30, %v754
    %v756 = vadd.f32 %v732, %v751
    %v757 = vadd.f32 %v733, %v755
    %v758 = vadd.f32 %v734, %v751
    %v759 = vadd.f32 %v735, %v755
    %v760 = vadd.f32 %v736, %v751
    %v761 = vadd.f32 %v737, %v755
    %v762 = vadd.f32 %v738, %v751
    %v763 = vadd.f32 %v739, %v755
    %v764 = vadd.f32 %v740, %v751
    %v765 = vadd.f32 %v741, %v755
    %v766 = vadd.f32 %v742, %v751
    %v767 = vadd.f32 %v743, %v755
    %v768 = vadd.f32 %v744, %v751
    %v769 = vadd.f32 %v745, %v755
    %v770 = vadd.f32 %v746, %v751
    %v771 = vadd.f32 %v747, %v755
    %v772 = vmax.f32 %v756, 0.0
    %v773 = vmax.f32 %v757, 0.0
    %v774 = vmax.f32 %v758, 0.0
    %v775 = vmax.f32 %v759, 0.0
    %v776 = vmax.f32 %v760, 0.0
    %v777 = vmax.f32 %v761, 0.0
    %v778 = vmax.f32 %v762, 0.0
    %v779 = vmax.f32 %v763, 0.0
    %v780 = vmax.f32 %v764, 0.0
    %v781 = vmax.f32 %v765, 0.0
    %v782 = vmax.f32 %v766, 0.0
    %v783 = vmax.f32 %v767, 0.0
    %v784 = vmax.f32 %v768, 0.0
    %v785 = vmax.f32 %v769, 0.0
    %v786 = vmax.f32 %v770, 0.0
    %v787 = vmax.f32 %v771, 0.0
    %v788 = vld [vmem:[#allocation2 + $0x120] sm:$0xff]
    %v789 = vld [vmem:[#allocation2 + $0x128] sm:$0xff]
    %v790 = vld [vmem:[#allocation2 + $0x130] sm:$0xff]
    %v791 = vld [vmem:[#allocation2 + $0x138] sm:$0xff]
    %v792 = vld [vmem:[#allocation2 + $0x140] sm:$0xff]
    %v793 = vld [vmem:[#allocation2 + $0x148] sm:$0xff]
    %v794 = vld [vmem:[#allocation2 + $0x150] sm:$0xff]
    %v795 = vld [vmem:[#allocation2 + $0x158] sm:$0xff]
    %v796 = vld [vmem:[#allocation2 + $0x160] sm:$0xff]
    %v797 = vld [vmem:[#allocation2 + $0x168] sm:$0xff]
    %v798 = vld [vmem:[#allocation2 + $0x170] sm:$0xff]
    %v799 = vld [vmem:[#allocation2 + $0x178] sm:$0xff]
    %v800 = vld [vmem:[#allocation2 + $0x180] sm:$0xff]
    %v801 = vld [vmem:[#allocation2 + $0x188] sm:$0xff]
    %v802 = vld [vmem:[#allocation2 + $0x190] sm:$0xff]
    %v803 = vld [vmem:[#allocation2 + $0x198] sm:$0xff]
    %v804 = vld [vmem:[#allocation2 + $0x1a0] sm:$0xff]
    %v805 = vld [vmem:[#allocation2 + $0x1a8] sm:$0xff]
    %v806 = vld [vmem:[#allocation2 + $0x1b0] sm:$0xff]
    %v807 = vld [vmem:[#allocation2 + $0x1b8] sm:$0xff]
    %v808 = vld [vmem:[#allocation2 + $0x1c0] sm:$0xff]
    %v809 = vld [vmem:[#allocation2 + $0x1c8] sm:$0xff]
    %v810 = vld [vmem:[#allocation2 + $0x1d0] sm:$0xff]
    %v811 = vld [vmem:[#allocation2 + $0x1d8] sm:$0xff]
    %v812 = vld [vmem:[#allocation2 + $0x1e0] sm:$0xff]
    %v813 = vld [vmem:[#allocation2 + $0x1e8] sm:$0xff]
    %v814 = vld [vmem:[#allocation2 + $0x1f0] sm:$0xff]
    %v815 = vld [vmem:[#allocation2 + $0x1f8] sm:$0xff]
    %v816 = vld [vmem:[#allocation2 + $0x200] sm:$0xff]
    %v817 = vld [vmem:[#allocation2 + $0x208] sm:$0xff]
    %v818 = vld [vmem:[#allocation2 + $0x210] sm:$0xff]
    %v819 = vld [vmem:[#allocation2 + $0x218] sm:$0xff]
    %v820 = vpack.c.bf16 %v774, %v772
    %v821 = vpack.c.bf16 %v775, %v773
    %v822 = vpack.c.bf16 %v778, %v776
    %v823 = vpack.c.bf16 %v779, %v777
    %v824 = vpack.c.bf16 %v782, %v780
    %v825 = vpack.c.bf16 %v783, %v781
    %v826 = vpack.c.bf16 %v786, %v784
    %v827 = vpack.c.bf16 %v787, %v785
    %v828 = vlaneseq
    %v829 = vshrl.u32 %v828, 7
    %v830 = vsub.s32 6, %v829
    %v831 = vrot.slane %v29, %v830
    %v832 = vlaneseq
    %v833 = vshrl.u32 %v832, 7
    %v834 = vsub.s32 6, %v833
    %v835 = vrot.slane %v30, %v834
    %v868 = vunpack.c.l.b16 %v788
    %v869 = vunpack.c.h.b16 %v788
    %v870 = vunpack.c.l.b16 %v789
    %v871 = vunpack.c.h.b16 %v789
    %v872 = vunpack.c.l.b16 %v790
    %v873 = vunpack.c.h.b16 %v790
    %v874 = vunpack.c.l.b16 %v791
    %v875 = vunpack.c.h.b16 %v791
    %v876 = vunpack.c.l.b16 %v792
    %v877 = vunpack.c.h.b16 %v792
    %v878 = vunpack.c.l.b16 %v793
    %v879 = vunpack.c.h.b16 %v793
    %v880 = vunpack.c.l.b16 %v794
    %v881 = vunpack.c.h.b16 %v794
    %v882 = vunpack.c.l.b16 %v795
    %v883 = vunpack.c.h.b16 %v795
    %v884 = vunpack.c.l.b16 %v796
    %v885 = vunpack.c.h.b16 %v796
    %v886 = vunpack.c.l.b16 %v797
    %v887 = vunpack.c.h.b16 %v797
    %v888 = vunpack.c.l.b16 %v798
    %v889 = vunpack.c.h.b16 %v798
    %v890 = vunpack.c.l.b16 %v799
    %v891 = vunpack.c.h.b16 %v799
    %v892 = vunpack.c.l.b16 %v800
    %v893 = vunpack.c.h.b16 %v800
    %v894 = vunpack.c.l.b16 %v801
    %v895 = vunpack.c.h.b16 %v801
    %v896 = vunpack.c.l.b16 %v802
    %v897 = vunpack.c.h.b16 %v802
    %v898 = vunpack.c.l.b16 %v803
    %v899 = vunpack.c.h.b16 %v803
    %v900 = vunpack.c.l.b16 %v804
    %v901 = vunpack.c.h.b16 %v804
    %v902 = vunpack.c.l.b16 %v805
    %v903 = vunpack.c.h.b16 %v805
    %v904 = vunpack.c.l.b16 %v806
    %v905 = vunpack.c.h.b16 %v806
    %v906 = vunpack.c.l.b16 %v807
    %v907 = vunpack.c.h.b16 %v807
    %v908 = vunpack.c.l.b16 %v808
    %v909 = vunpack.c.h.b16 %v808
    %v910 = vunpack.c.l.b16 %v809
    %v911 = vunpack.c.h.b16 %v809
    %v912 = vunpack.c.l.b16 %v810
    %v913 = vunpack.c.h.b16 %v810
    %v914 = vunpack.c.l.b16 %v811
    %v915 = vunpack.c.h.b16 %v811
    %v916 = vunpack.c.l.b16 %v812
    %v917 = vunpack.c.h.b16 %v812
    %v918 = vunpack.c.l.b16 %v813
    %v919 = vunpack.c.h.b16 %v813
    %v920 = vunpack.c.l.b16 %v814
    %v921 = vunpack.c.h.b16 %v814
    %v922 = vunpack.c.l.b16 %v815
    %v923 = vunpack.c.h.b16 %v815
    %v924 = vunpack.c.l.b16 %v816
    %v925 = vunpack.c.h.b16 %v816
    %v926 = vunpack.c.l.b16 %v817
    %v927 = vunpack.c.h.b16 %v817
    %v928 = vunpack.c.l.b16 %v818
    %v929 = vunpack.c.h.b16 %v818
    %v930 = vunpack.c.l.b16 %v819
    %v931 = vunpack.c.h.b16 %v819
    %v932 = vpack.c.b16 %v870, %v868
    %v933 = vpack.c.b16 %v871, %v869
    %v934 = vpack.c.b16 %v874, %v872
    %v935 = vpack.c.b16 %v875, %v873
    %v936 = vpack.c.b16 %v878, %v876
    %v937 = vpack.c.b16 %v879, %v877
    %v938 = vpack.c.b16 %v882, %v880
    %v939 = vpack.c.b16 %v883, %v881
    %v940 = vpack.c.b16 %v886, %v884
    %v941 = vpack.c.b16 %v887, %v885
    %v942 = vpack.c.b16 %v890, %v888
    %v943 = vpack.c.b16 %v891, %v889
    %v944 = vpack.c.b16 %v894, %v892
    %v945 = vpack.c.b16 %v895, %v893
    %v946 = vpack.c.b16 %v898, %v896
    %v947 = vpack.c.b16 %v899, %v897
    %v948 = vpack.c.b16 %v902, %v900
    %v949 = vpack.c.b16 %v903, %v901
    %v950 = vpack.c.b16 %v906, %v904
    %v951 = vpack.c.b16 %v907, %v905
    %v952 = vpack.c.b16 %v910, %v908
    %v953 = vpack.c.b16 %v911, %v909
    %v954 = vpack.c.b16 %v914, %v912
    %v955 = vpack.c.b16 %v915, %v913
    %v956 = vpack.c.b16 %v918, %v916
    %v957 = vpack.c.b16 %v919, %v917
    %v958 = vpack.c.b16 %v922, %v920
    %v959 = vpack.c.b16 %v923, %v921
    %v960 = vpack.c.b16 %v926, %v924
    %v961 = vpack.c.b16 %v927, %v925
    %v962 = vpack.c.b16 %v930, %v928
    %v963 = vpack.c.b16 %v931, %v929
    %996 = vmatprep.subr.bf16.mxu0 %v947
    %997 = vmatpush1.bf16.msra.mxu0 %v946
    %998 = vmatprep.subr.bf16.mxu0 %v945
    %999 = vmatpush1.bf16.msra.mxu0 %v944
    %1000 = vmatprep.subr.bf16.mxu0 %v943
    %1001 = vmatpush1.bf16.msra.mxu0 %v942
    %1002 = vmatprep.subr.bf16.mxu0 %v941
    %1003 = vmatpush1.bf16.msra.mxu0 %v940
    %1004 = vmatprep.subr.bf16.mxu0 %v939
    %1005 = vmatpush1.bf16.msra.mxu0 %v938
    %1006 = vmatprep.subr.bf16.mxu0 %v937
    %1007 = vmatpush1.bf16.msra.mxu0 %v936
    %1008 = vmatprep.subr.bf16.mxu0 %v935
    %1009 = vmatpush1.bf16.msra.mxu0 %v934
    %1010 = vmatprep.subr.bf16.mxu0 %v933
    %1011 = vmatpush1.bf16.msra.mxu0 %v932
    %1012 = vmatprep.subr.bf16.mxu0 %v963
    %1013 = vmatpush2.bf16.msra.mxu0 %v962
    %1014 = vmatprep.subr.bf16.mxu0 %v961
    %1015 = vmatpush2.bf16.msra.mxu0 %v960
    %1016 = vmatprep.subr.bf16.mxu0 %v959
    %1017 = vmatpush2.bf16.msra.mxu0 %v958
    %1018 = vmatprep.subr.bf16.mxu0 %v957
    %1019 = vmatpush2.bf16.msra.mxu0 %v956
    %1020 = vmatprep.subr.bf16.mxu0 %v955
    %1021 = vmatpush2.bf16.msra.mxu0 %v954
    %1022 = vmatprep.subr.bf16.mxu0 %v953
    %1023 = vmatpush2.bf16.msra.mxu0 %v952
    %1024 = vmatprep.subr.bf16.mxu0 %v951
    %1025 = vmatpush2.bf16.msra.mxu0 %v950
    %1026 = vmatprep.subr.bf16.mxu0 %v949
    %1027 = vmatpush2.bf16.msra.mxu0 %v948
    %1028 = vmatprep.mubr.bf16.mxu0 %v821
    %1029 = vmatmul.mubr.bf16.gmra.mxu0 %v820
    %v1030 = vpop.f32.mrf.mxu0
    %v1031 = vadd.f32 %v831, %v1030
    %v1032 = vpop.f32.mrf.mxu0
    %v1033 = vadd.f32 %v835, %v1032
    %v1034 = vpop.f32.mrf.mxu0
    %v1035 = vadd.f32 %v831, %v1034
    %v1036 = vpop.f32.mrf.mxu0
    %v1037 = vadd.f32 %v835, %v1036
    %1038 = vmatprep.mubr.bf16.mxu0 %v823
    %1039 = vmatmul.mubr.bf16.gmra.mxu0 %v822
    %v1040 = vpop.f32.mrf.mxu0
    %v1041 = vadd.f32 %v831, %v1040
    %v1042 = vpop.f32.mrf.mxu0
    %v1043 = vadd.f32 %v835, %v1042
    %v1044 = vpop.f32.mrf.mxu0
    %v1045 = vadd.f32 %v831, %v1044
    %v1046 = vpop.f32.mrf.mxu0
    %v1047 = vadd.f32 %v835, %v1046
    %1048 = vmatprep.mubr.bf16.mxu0 %v825
    %1049 = vmatmul.mubr.bf16.gmra.mxu0 %v824
    %v1050 = vpop.f32.mrf.mxu0
    %v1051 = vadd.f32 %v831, %v1050
    %v1052 = vpop.f32.mrf.mxu0
    %v1053 = vadd.f32 %v835, %v1052
    %v1054 = vpop.f32.mrf.mxu0
    %v1055 = vadd.f32 %v831, %v1054
    %v1056 = vpop.f32.mrf.mxu0
    %v1057 = vadd.f32 %v835, %v1056
    %1058 = vmatprep.mubr.bf16.mxu0 %v827
    %1059 = vmatmul.mubr.bf16.gmra.mxu0 %v826
    %v1060 = vpop.f32.mrf.mxu0
    %v1061 = vadd.f32 %v831, %v1060
    %v1062 = vpop.f32.mrf.mxu0
    %v1063 = vadd.f32 %v835, %v1062
    %v1064 = vpop.f32.mrf.mxu0
    %v1065 = vadd.f32 %v831, %v1064
    %v1066 = vpop.f32.mrf.mxu0
    %v1067 = vadd.f32 %v835, %v1066
    %1068 = vdwg.mxu0
    %v1069 = vadd.f32 %v1031, %v1035
    %v1070 = vadd.f32 %v1069, %v1041
    %v1071 = vadd.f32 %v1070, %v1045
    %v1072 = vadd.f32 %v1071, %v1051
    %v1073 = vadd.f32 %v1072, %v1055
    %v1074 = vadd.f32 %v1073, %v1061
    %v1075 = vadd.f32 %v1074, %v1065
    %v1076 = vrot.slane %v1075, 4
    %v1077 = vadd.f32 %v1075, %v1076
    %v1078 = vrot.slane %v1077, 2
    %v1079 = vadd.f32 %v1077, %v1078
    %v1080 = vrot.slane %v1079, 1
    %v1081 = vadd.f32 %v1079, %v1080
    %v1082 = vadd.f32 %v1033, %v1037
    %v1083 = vadd.f32 %v1082, %v1043
    %v1084 = vadd.f32 %v1083, %v1047
    %v1085 = vadd.f32 %v1084, %v1053
    %v1086 = vadd.f32 %v1085, %v1057
    %v1087 = vadd.f32 %v1086, %v1063
    %v1088 = vadd.f32 %v1087, %v1067
    %v1089 = vrot.slane %v1088, 4
    %v1090 = vadd.f32 %v1088, %v1089
    %v1091 = vrot.slane %v1090, 2
    %v1092 = vadd.f32 %v1090, %v1091
    %v1093 = vrot.slane %v1092, 1
    %v1094 = vadd.f32 %v1092, %v1093
    %v1095 = vmul.f32 %v1081, 0.015625
    %v1096 = vmul.f32 %v1094, 0.015625
    %v1097 = vsub.f32 %v1031, %v1095
    %v1098 = vsub.f32 %v1033, %v1096
    %v1099 = vsub.f32 %v1035, %v1095
    %v1100 = vsub.f32 %v1037, %v1096
    %v1101 = vsub.f32 %v1041, %v1095
    %v1102 = vsub.f32 %v1043, %v1096
    %v1103 = vsub.f32 %v1045, %v1095
    %v1104 = vsub.f32 %v1047, %v1096
    %v1105 = vsub.f32 %v1051, %v1095
    %v1106 = vsub.f32 %v1053, %v1096
    %v1107 = vsub.f32 %v1055, %v1095
    %v1108 = vsub.f32 %v1057, %v1096
    %v1109 = vsub.f32 %v1061, %v1095
    %v1110 = vsub.f32 %v1063, %v1096
    %v1111 = vsub.f32 %v1065, %v1095
    %v1112 = vsub.f32 %v1067, %v1096
    %v1113 = vmul.f32 %v1097, %v1097
    %v1114 = vmul.f32 %v1098, %v1098
    %v1115 = vmul.f32 %v1099, %v1099
    %v1116 = vmul.f32 %v1100, %v1100
    %v1117 = vmul.f32 %v1101, %v1101
    %v1118 = vmul.f32 %v1102, %v1102
    %v1119 = vmul.f32 %v1103, %v1103
    %v1120 = vmul.f32 %v1104, %v1104
    %v1121 = vmul.f32 %v1105, %v1105
    %v1122 = vmul.f32 %v1106, %v1106
    %v1123 = vmul.f32 %v1107, %v1107
    %v1124 = vmul.f32 %v1108, %v1108
    %v1125 = vmul.f32 %v1109, %v1109
    %v1126 = vmul.f32 %v1110, %v1110
    %v1127 = vmul.f32 %v1111, %v1111
    %v1128 = vmul.f32 %v1112, %v1112
    %v1129 = vadd.f32 %v1113, %v1115
    %v1130 = vadd.f32 %v1129, %v1117
    %v1131 = vadd.f32 %v1130, %v1119
    %v1132 = vadd.f32 %v1131, %v1121
    %v1133 = vadd.f32 %v1132, %v1123
    %v1134 = vadd.f32 %v1133, %v1125
    %v1135 = vadd.f32 %v1134, %v1127
    %v1136 = vrot.slane %v1135, 4
    %v1137 = vadd.f32 %v1135, %v1136
    %v1138 = vrot.slane %v1137, 2
    %v1139 = vadd.f32 %v1137, %v1138
    %v1140 = vrot.slane %v1139, 1
    %v1141 = vadd.f32 %v1139, %v1140
    %v1142 = vadd.f32 %v1114, %v1116
    %v1143 = vadd.f32 %v1142, %v1118
    %v1144 = vadd.f32 %v1143, %v1120
    %v1145 = vadd.f32 %v1144, %v1122
    %v1146 = vadd.f32 %v1145, %v1124
    %v1147 = vadd.f32 %v1146, %v1126
    %v1148 = vadd.f32 %v1147, %v1128
    %v1149 = vrot.slane %v1148, 4
    %v1150 = vadd.f32 %v1148, %v1149
    %v1151 = vrot.slane %v1150, 2
    %v1152 = vadd.f32 %v1150, %v1151
    %v1153 = vrot.slane %v1152, 1
    %v1154 = vadd.f32 %v1152, %v1153
    %v1155 = vmul.f32 %v1141, 0.015625
    %v1156 = vmul.f32 %v1154, 0.015625
    %v1157 = vadd.f32 %v1155, 1e-05
    %v1158 = vadd.f32 %v1156, 1e-05
    %v1159 = vrsqrt.pop %v1157
    %v1160 = vrsqrt.pop %v1158
    %v1161 = vmul.f32 %v1097, %v1159
    %v1162 = vmul.f32 %v1098, %v1160
    %v1163 = vmul.f32 %v1099, %v1159
    %v1164 = vmul.f32 %v1100, %v1160
    %v1165 = vmul.f32 %v1101, %v1159
    %v1166 = vmul.f32 %v1102, %v1160
    %v1167 = vmul.f32 %v1103, %v1159
    %v1168 = vmul.f32 %v1104, %v1160
    %v1169 = vmul.f32 %v1105, %v1159
    %v1170 = vmul.f32 %v1106, %v1160
    %v1171 = vmul.f32 %v1107, %v1159
    %v1172 = vmul.f32 %v1108, %v1160
    %v1173 = vmul.f32 %v1109, %v1159
    %v1174 = vmul.f32 %v1110, %v1160
    %v1175 = vmul.f32 %v1111, %v1159
    %v1176 = vmul.f32 %v1112, %v1160
    %v1177 = vlaneseq
    %v1178 = vshrl.u32 %v1177, 7
    %v1179 = vsub.s32 7, %v1178
    %v1180 = vrot.slane %v29, %v1179
    %v1181 = vlaneseq
    %v1182 = vshrl.u32 %v1181, 7
    %v1183 = vsub.s32 7, %v1182
    %v1184 = vrot.slane %v30, %v1183
    %v1185 = vmul.f32 %v1161, %v1180
    %v1186 = vmul.f32 %v1162, %v1184
    %v1187 = vmul.f32 %v1163, %v1180
    %v1188 = vmul.f32 %v1164, %v1184
    %v1189 = vmul.f32 %v1165, %v1180
    %v1190 = vmul.f32 %v1166, %v1184
    %v1191 = vmul.f32 %v1167, %v1180
    %v1192 = vmul.f32 %v1168, %v1184
    %v1193 = vmul.f32 %v1169, %v1180
    %v1194 = vmul.f32 %v1170, %v1184
    %v1195 = vmul.f32 %v1171, %v1180
    %v1196 = vmul.f32 %v1172, %v1184
    %v1197 = vmul.f32 %v1173, %v1180
    %v1198 = vmul.f32 %v1174, %v1184
    %v1199 = vmul.f32 %v1175, %v1180
    %v1200 = vmul.f32 %v1176, %v1184
    %v1201 = vlaneseq
    %v1202 = vshrl.u32 %v1201, 7
    %v1203 = vsub.s32 0, %v1202
    %v1204 = vrot.slane %v31, %v1203
    %v1205 = vlaneseq
    %v1206 = vshrl.u32 %v1205, 7
    %v1207 = vsub.s32 0, %v1206
    %v1208 = vrot.slane %v32, %v1207
    %v1209 = vadd.f32 %v1185, %v1204
    %v1210 = vadd.f32 %v1186, %v1208
    %v1211 = vadd.f32 %v1187, %v1204
    %v1212 = vadd.f32 %v1188, %v1208
    %v1213 = vadd.f32 %v1189, %v1204
    %v1214 = vadd.f32 %v1190, %v1208
    %v1215 = vadd.f32 %v1191, %v1204
    %v1216 = vadd.f32 %v1192, %v1208
    %v1217 = vadd.f32 %v1193, %v1204
    %v1218 = vadd.f32 %v1194, %v1208
    %v1219 = vadd.f32 %v1195, %v1204
    %v1220 = vadd.f32 %v1196, %v1208
    %v1221 = vadd.f32 %v1197, %v1204
    %v1222 = vadd.f32 %v1198, %v1208
    %v1223 = vadd.f32 %v1199, %v1204
    %v1224 = vadd.f32 %v1200, %v1208
    %v1225 = vmax.f32 %v1209, 0.0
    %v1226 = vmax.f32 %v1210, 0.0
    %v1227 = vmax.f32 %v1211, 0.0
    %v1228 = vmax.f32 %v1212, 0.0
    %v1229 = vmax.f32 %v1213, 0.0
    %v1230 = vmax.f32 %v1214, 0.0
    %v1231 = vmax.f32 %v1215, 0.0
    %v1232 = vmax.f32 %v1216, 0.0
    %v1233 = vmax.f32 %v1217, 0.0
    %v1234 = vmax.f32 %v1218, 0.0
    %v1235 = vmax.f32 %v1219, 0.0
    %v1236 = vmax.f32 %v1220, 0.0
    %v1237 = vmax.f32 %v1221, 0.0
    %v1238 = vmax.f32 %v1222, 0.0
    %v1239 = vmax.f32 %v1223, 0.0
    %v1240 = vmax.f32 %v1224, 0.0
    %v1241 = vld [vmem:[#allocation2 + $0x220] sm:$0xf]
    %v1242 = vld [vmem:[#allocation2 + $0x228] sm:$0xf]
    %v1243 = vld [vmem:[#allocation2 + $0x230] sm:$0xf]
    %v1244 = vld [vmem:[#allocation2 + $0x238] sm:$0xf]
    %v1245 = vld [vmem:[#allocation2 + $0x240] sm:$0xf]
    %v1246 = vld [vmem:[#allocation2 + $0x248] sm:$0xf]
    %v1247 = vld [vmem:[#allocation2 + $0x250] sm:$0xf]
    %v1248 = vld [vmem:[#allocation2 + $0x258] sm:$0xf]
    %v1249 = vld [vmem:[#allocation2 + $0x260] sm:$0xf]
    %v1250 = vld [vmem:[#allocation2 + $0x268] sm:$0xf]
    %v1251 = vld [vmem:[#allocation2 + $0x270] sm:$0xf]
    %v1252 = vld [vmem:[#allocation2 + $0x278] sm:$0xf]
    %v1253 = vld [vmem:[#allocation2 + $0x280] sm:$0xf]
    %v1254 = vld [vmem:[#allocation2 + $0x288] sm:$0xf]
    %v1255 = vld [vmem:[#allocation2 + $0x290] sm:$0xf]
    %v1256 = vld [vmem:[#allocation2 + $0x298] sm:$0xf]
    %v1257 = vld [vmem:[#allocation2 + $0x2a0] sm:$0xf]
    %v1258 = vld [vmem:[#allocation2 + $0x2a8] sm:$0xf]
    %v1259 = vld [vmem:[#allocation2 + $0x2b0] sm:$0xf]
    %v1260 = vld [vmem:[#allocation2 + $0x2b8] sm:$0xf]
    %v1261 = vld [vmem:[#allocation2 + $0x2c0] sm:$0xf]
    %v1262 = vld [vmem:[#allocation2 + $0x2c8] sm:$0xf]
    %v1263 = vld [vmem:[#allocation2 + $0x2d0] sm:$0xf]
    %v1264 = vld [vmem:[#allocation2 + $0x2d8] sm:$0xf]
    %v1265 = vld [vmem:[#allocation2 + $0x2e0] sm:$0xf]
    %v1266 = vld [vmem:[#allocation2 + $0x2e8] sm:$0xf]
    %v1267 = vld [vmem:[#allocation2 + $0x2f0] sm:$0xf]
    %v1268 = vld [vmem:[#allocation2 + $0x2f8] sm:$0xf]
    %v1269 = vld [vmem:[#allocation2 + $0x300] sm:$0xf]
    %v1270 = vld [vmem:[#allocation2 + $0x308] sm:$0xf]
    %v1271 = vld [vmem:[#allocation2 + $0x310] sm:$0xf]
    %v1272 = vld [vmem:[#allocation2 + $0x318] sm:$0xf]
    %v1273 = vpack.c.bf16 %v1227, %v1225
    %v1274 = vpack.c.bf16 %v1228, %v1226
    %v1275 = vpack.c.bf16 %v1231, %v1229
    %v1276 = vpack.c.bf16 %v1232, %v1230
    %v1277 = vpack.c.bf16 %v1235, %v1233
    %v1278 = vpack.c.bf16 %v1236, %v1234
    %v1279 = vpack.c.bf16 %v1239, %v1237
    %v1280 = vpack.c.bf16 %v1240, %v1238
    %v1281 = vlaneseq
    %v1282 = vshrl.u32 %v1281, 7
    %v1283 = vsub.s32 1, %v1282
    %v1284 = vrot.slane %v31, %v1283
    %v1317 = vunpack.c.l.b16 %v1241
    %v1318 = vunpack.c.l.b16 %v1242
    %v1319 = vunpack.c.l.b16 %v1243
    %v1320 = vunpack.c.l.b16 %v1244
    %v1321 = vunpack.c.l.b16 %v1245
    %v1322 = vunpack.c.l.b16 %v1246
    %v1323 = vunpack.c.l.b16 %v1247
    %v1324 = vunpack.c.l.b16 %v1248
    %v1325 = vunpack.c.l.b16 %v1249
    %v1326 = vunpack.c.l.b16 %v1250
    %v1327 = vunpack.c.l.b16 %v1251
    %v1328 = vunpack.c.l.b16 %v1252
    %v1329 = vunpack.c.l.b16 %v1253
    %v1330 = vunpack.c.l.b16 %v1254
    %v1331 = vunpack.c.l.b16 %v1255
    %v1332 = vunpack.c.l.b16 %v1256
    %v1333 = vunpack.c.l.b16 %v1257
    %v1334 = vunpack.c.l.b16 %v1258
    %v1335 = vunpack.c.l.b16 %v1259
    %v1336 = vunpack.c.l.b16 %v1260
    %v1337 = vunpack.c.l.b16 %v1261
    %v1338 = vunpack.c.l.b16 %v1262
    %v1339 = vunpack.c.l.b16 %v1263
    %v1340 = vunpack.c.l.b16 %v1264
    %v1341 = vunpack.c.l.b16 %v1265
    %v1342 = vunpack.c.l.b16 %v1266
    %v1343 = vunpack.c.l.b16 %v1267
    %v1344 = vunpack.c.l.b16 %v1268
    %v1345 = vunpack.c.l.b16 %v1269
    %v1346 = vunpack.c.l.b16 %v1270
    %v1347 = vunpack.c.l.b16 %v1271
    %v1348 = vunpack.c.l.b16 %v1272
    %v1349 = vpack.c.b16 %v1318, %v1317
    %v1350 = vpack.c.b16 %v1320, %v1319
    %v1351 = vpack.c.b16 %v1322, %v1321
    %v1352 = vpack.c.b16 %v1324, %v1323
    %v1353 = vpack.c.b16 %v1326, %v1325
    %v1354 = vpack.c.b16 %v1328, %v1327
    %v1355 = vpack.c.b16 %v1330, %v1329
    %v1356 = vpack.c.b16 %v1332, %v1331
    %v1357 = vpack.c.b16 %v1334, %v1333
    %v1358 = vpack.c.b16 %v1336, %v1335
    %v1359 = vpack.c.b16 %v1338, %v1337
    %v1360 = vpack.c.b16 %v1340, %v1339
    %v1361 = vpack.c.b16 %v1342, %v1341
    %v1362 = vpack.c.b16 %v1344, %v1343
    %v1363 = vpack.c.b16 %v1346, %v1345
    %v1364 = vpack.c.b16 %v1348, %v1347
    %1381 = vmatprep.subr.bf16.mxu0 0
    %1382 = vmatpush1.bf16.msra.mxu0 %v1356
    %1383 = vmatprep.subr.bf16.mxu0 0
    %1384 = vmatpush1.bf16.msra.mxu0 %v1355
    %1385 = vmatprep.subr.bf16.mxu0 0
    %1386 = vmatpush1.bf16.msra.mxu0 %v1354
    %1387 = vmatprep.subr.bf16.mxu0 0
    %1388 = vmatpush1.bf16.msra.mxu0 %v1353
    %1389 = vmatprep.subr.bf16.mxu0 0
    %1390 = vmatpush1.bf16.msra.mxu0 %v1352
    %1391 = vmatprep.subr.bf16.mxu0 0
    %1392 = vmatpush1.bf16.msra.mxu0 %v1351
    %1393 = vmatprep.subr.bf16.mxu0 0
    %1394 = vmatpush1.bf16.msra.mxu0 %v1350
    %1395 = vmatprep.subr.bf16.mxu0 0
    %1396 = vmatpush1.bf16.msra.mxu0 %v1349
    %1397 = vmatprep.subr.bf16.mxu0 0
    %1398 = vmatpush2.bf16.msra.mxu0 %v1364
    %1399 = vmatprep.subr.bf16.mxu0 0
    %1400 = vmatpush2.bf16.msra.mxu0 %v1363
    %1401 = vmatprep.subr.bf16.mxu0 0
    %1402 = vmatpush2.bf16.msra.mxu0 %v1362
    %1403 = vmatprep.subr.bf16.mxu0 0
    %1404 = vmatpush2.bf16.msra.mxu0 %v1361
    %1405 = vmatprep.subr.bf16.mxu0 0
    %1406 = vmatpush2.bf16.msra.mxu0 %v1360
    %1407 = vmatprep.subr.bf16.mxu0 0
    %1408 = vmatpush2.bf16.msra.mxu0 %v1359
    %1409 = vmatprep.subr.bf16.mxu0 0
    %1410 = vmatpush2.bf16.msra.mxu0 %v1358
    %1411 = vmatprep.subr.bf16.mxu0 0
    %1412 = vmatpush2.bf16.msra.mxu0 %v1357
    %1413 = vmatprep.mubr.bf16.mxu0 %v1274
    %1414 = vmatmul.mubr.bf16.gmra.mxu0 %v1273
    %v1415 = vpop.f32.mrf.mxu0
    %v1416 = vadd.f32 %v1284, %v1415
    %v1417 = vpop.f32.mrf.mxu0
    %v1418 = vpop.f32.mrf.mxu0
    %v1419 = vadd.f32 %v1284, %v1418
    %v1420 = vpop.f32.mrf.mxu0
    %1421 = vmatprep.mubr.bf16.mxu0 %v1276
    %1422 = vmatmul.mubr.bf16.gmra.mxu0 %v1275
    %v1423 = vpop.f32.mrf.mxu0
    %v1424 = vadd.f32 %v1284, %v1423
    %v1425 = vpop.f32.mrf.mxu0
    %v1426 = vpop.f32.mrf.mxu0
    %v1427 = vadd.f32 %v1284, %v1426
    %v1428 = vpop.f32.mrf.mxu0
    %1429 = vmatprep.mubr.bf16.mxu0 %v1278
    %1430 = vmatmul.mubr.bf16.gmra.mxu0 %v1277
    %v1431 = vpop.f32.mrf.mxu0
    %v1432 = vadd.f32 %v1284, %v1431
    %v1433 = vpop.f32.mrf.mxu0
    %v1434 = vpop.f32.mrf.mxu0
    %v1435 = vadd.f32 %v1284, %v1434
    %v1436 = vpop.f32.mrf.mxu0
    %1437 = vmatprep.mubr.bf16.mxu0 %v1280
    %1438 = vmatmul.mubr.bf16.gmra.mxu0 %v1279
    %v1439 = vpop.f32.mrf.mxu0
    %v1440 = vadd.f32 %v1284, %v1439
    %v1441 = vpop.f32.mrf.mxu0
    %v1442 = vpop.f32.mrf.mxu0
    %v1443 = vadd.f32 %v1284, %v1442
    %v1444 = vpop.f32.mrf.mxu0
    %1445 = vdwg.mxu0
    %v1446 = vxor.u32 %v1416, 2147483648
    %v1447 = vxor.u32 %v1419, 2147483648
    %v1448 = vxor.u32 %v1424, 2147483648
    %v1449 = vxor.u32 %v1427, 2147483648
    %v1450 = vxor.u32 %v1432, 2147483648
    %v1451 = vxor.u32 %v1435, 2147483648
    %v1452 = vxor.u32 %v1440, 2147483648
    %v1453 = vxor.u32 %v1443, 2147483648
    %v1454 = vmul.f32 %v1446, 1.442695
    %v1455 = vpow.pop %v1454
    %v1456 = vmul.f32 %v1447, 1.442695
    %v1457 = vpow.pop %v1456
    %v1458 = vmul.f32 %v1448, 1.442695
    %v1459 = vpow.pop %v1458
    %v1460 = vmul.f32 %v1449, 1.442695
    %v1461 = vpow.pop %v1460
    %v1462 = vmul.f32 %v1450, 1.442695
    %v1463 = vpow.pop %v1462
    %v1464 = vmul.f32 %v1451, 1.442695
    %v1465 = vpow.pop %v1464
    %v1466 = vmul.f32 %v1452, 1.442695
    %v1467 = vpow.pop %v1466
    %v1468 = vmul.f32 %v1453, 1.442695
    %v1469 = vpow.pop %v1468
    %v1470 = vadd.f32 %v1455, 1.0
    %v1471 = vadd.f32 %v1457, 1.0
    %v1472 = vadd.f32 %v1459, 1.0
    %v1473 = vadd.f32 %v1461, 1.0
    %v1474 = vadd.f32 %v1463, 1.0
    %v1475 = vadd.f32 %v1465, 1.0
    %v1476 = vadd.f32 %v1467, 1.0
    %v1477 = vadd.f32 %v1469, 1.0
    %v1478 = vrcp.pop %v1470
    %v1479 = vmul.f32 1.0, %v1478
    %v1480 = vrcp.pop %v1471
    %v1481 = vmul.f32 1.0, %v1480
    %v1482 = vrcp.pop %v1472
    %v1483 = vmul.f32 1.0, %v1482
    %v1484 = vrcp.pop %v1473
    %v1485 = vmul.f32 1.0, %v1484
    %v1486 = vrcp.pop %v1474
    %v1487 = vmul.f32 1.0, %v1486
    %v1488 = vrcp.pop %v1475
    %v1489 = vmul.f32 1.0, %v1488
    %v1490 = vrcp.pop %v1476
    %v1491 = vmul.f32 1.0, %v1490
    %v1492 = vrcp.pop %v1477
    %v1493 = vmul.f32 1.0, %v1492
    %1494 = vst [vmem:[%s3] sm:$0xff] %v1479
    %1495 = vst [vmem:[%s3 + $0x8] sm:$0xff] %v1481
    %1496 = vst [vmem:[%s3 + $0x10] sm:$0xff] %v1483
    %1497 = vst [vmem:[%s3 + $0x18] sm:$0xff] %v1485
    %1498 = vst [vmem:[%s3 + $0x20] sm:$0xff] %v1487
    %1499 = vst [vmem:[%s3 + $0x28] sm:$0xff] %v1489
    %1500 = vst [vmem:[%s3 + $0x30] sm:$0xff] %v1491
    %1501 = vst [vmem:[%s3 + $0x38] sm:$0xff] %v1493
    // Predicated region
    $region18: #{_lambda_.1} parent=1 // pred_check
      _
    $region19: #{_lambda_.1} parent=1 // pred_check_branch
      %1503 = sbr.rel (0) target = $region21
    $region20: #{_lambda_.1} parent=1 // pred_region
      _
    $region21: #{_lambda_.1} parent=1 // pred_fallthru
      _
    // Predicated region
    $region22: #{_lambda_.1} parent=1 // pred_check
      _
    $region23: #{_lambda_.1} parent=1 // pred_check_branch
      %1505 = sbr.rel (0) target = $region25
    $region24: #{_lambda_.1} parent=1 // pred_region
      _
    $region25: #{_lambda_.1} parent=1 // pred_fallthru
      _
    %1506 = vsyncpa [#allocation3], 1

</llo_original>
